<compile_context>
chip_gen: v6e
topology: v6e:2x2x1
jax: 0.10.0
libtpu: 0.0.40
codegen_flags: <defaults>
</compile_context>

<pallas_src>
import functools

import numpy as np
import jax
import jax.numpy as jnp
from jax import lax
from jax.experimental import pallas as pl
from jax.experimental.pallas import tpu as pltpu

ALPHA_SPATIAL = 0.2
ALPHA_PHYSICS = 0.05
ALPHA_CORRELATION = 0.15


# ----------------------------------------------------------------------------
# Kernel: one station-row tile per grid step, partial sums -> resident out block
# ----------------------------------------------------------------------------
def _make_loss_kernel(n_real_stations: int, tm: int, r_steps: int, n_t: int):
    inv_nt = 1.0 / n_t

    def kernel(pred_ref, targ_ref, w_ref, amps_ref, phases_ref, out_ref, rhs_ref):
        g = pl.program_id(0)          # parallel group (megacore split)
        r = pl.program_id(1)          # row-tile index inside the group (arbitrary)

        # --- once per group: build the (N_pad,16) MXU RHS in persistent scratch ---
        @pl.when(r == 0)
        def _():
            amps = amps_ref[...].astype(jnp.float32)         # (N_pad, 4)
            ph = phases_ref[...].astype(jnp.float32)
            s = jnp.sin(ph)
            c = jnp.cos(ph)
            rhs_ref[...] = jnp.concatenate([amps, s * s, s * c, c * c], axis=1)
            out_ref[...] = jnp.zeros_like(out_ref)

        pred = pred_ref[...].astype(jnp.float32)             # (TM, n_t) - no lane pad
        targ = targ_ref[...].astype(jnp.float32)
        w = w_ref[...].astype(jnp.float32)                   # (TM, N_pad)

        # ---- primary (smooth-L1) + correlation raw moments: ONE sweep ----
        d = pred - targ
        ad = jnp.abs(d)
        huber_p = jnp.sum(jnp.where(ad < 1.0, 0.5 * d * d, ad - 0.5), keepdims=True)

        sp = jnp.sum(pred, axis=1, keepdims=True)            # (TM, 1)
        st = jnp.sum(targ, axis=1, keepdims=True)
        spt = jnp.sum(pred * targ, axis=1, keepdims=True)
        sp2 = jnp.sum(pred * pred, axis=1, keepdims=True)
        st2 = jnp.sum(targ * targ, axis=1, keepdims=True)
        num = spt - sp * st * inv_nt
        varp = jnp.maximum(sp2 - sp * sp * inv_nt, 0.0)      # clamp fp cancellation
        vart = jnp.maximum(st2 - st * st * inv_nt, 0.0)
        den = jnp.sqrt(varp * vart)
        ok = den > 1e-8
        cl = jnp.where(ok, 1.0 - num / jnp.where(ok, den, 1.0), 1.0)
        # mask padded station rows (they would otherwise register cl == 1)
        row0 = (g * r_steps + r) * tm
        rows = row0 + lax.broadcasted_iota(jnp.int32, cl.shape, 0)
        cl = jnp.where(rows < n_real_stations, cl, 0.0)
        corr_p = jnp.sum(cl, keepdims=True)
        corr2_p = jnp.sum(cl * cl, keepdims=True)

        # ---- spatial consistency: fused (TM,N)@(N,16) MXU pass ----
        wr = jnp.dot(w, rhs_ref[...], preferred_element_type=jnp.float32)   # (TM,16)
        row_start = pl.multiple_of(row0, tm)
        mine = rhs_ref[pl.ds(row_start, tm), :]              # this tile's rows of rhs
        amps_i = mine[:, 0:4]
        s2_i = mine[:, 4:8]
        sc_i = mine[:, 8:12]
        c2_i = mine[:, 12:16]
        amp_pen = (amps_i - wr[:, 0:4]) ** 2
        # sum_j w_ij sin^2(ph_j - ph_i) via angle-difference expansion; clamp the
        # tiny negative fp32 cancellation (reference term is >= 0)
        phase_pen = jnp.maximum(
            c2_i * wr[:, 4:8] - 2.0 * sc_i * wr[:, 8:12] + s2_i * wr[:, 12:16], 0.0)
        col4 = lax.broadcasted_iota(jnp.int32, amp_pen.shape, 1)
        coef = jnp.where(col4 == 2, 1.5, 1.0)                # annual component x1.5
        spatial_p = jnp.sum((amp_pen + 0.5 * phase_pen) * coef, keepdims=True)

        # ---- physics partials (padded rows are all-zero -> contribute 0) ----
        tot_amp = jnp.sum(amps_i, axis=1, keepdims=True)
        ampmax_p = jnp.sum(jnp.maximum(tot_amp - 100.0, 0.0), keepdims=True)
        annual = amps_i[:, 2:3]
        max_other = jnp.max(jnp.where(col4 == 2, -jnp.inf, amps_i),
                            axis=1, keepdims=True)
        annual_p = jnp.sum(jnp.maximum(max_other - annual, 0.0), keepdims=True)
        prog_p = jnp.sum(jnp.maximum(amps_i[:, 0:1] - amps_i[:, 1:2], 0.0) +
                         jnp.maximum(amps_i[:, 1:2] - amps_i[:, 2:3], 0.0),
                         keepdims=True)

        # ---- accumulate 7 partial sums into this group's resident output block ----
        sub = lax.broadcasted_iota(jnp.int32, out_ref.shape, 1)
        lane = lax.broadcasted_iota(jnp.int32, out_ref.shape, 2)
        at0 = sub == 0
        acc = (jnp.where(at0 & (lane == 0), huber_p, 0.0) +
               jnp.where(at0 & (lane == 1), spatial_p, 0.0) +
               jnp.where(at0 & (lane == 2), ampmax_p, 0.0) +
               jnp.where(at0 & (lane == 3), annual_p, 0.0) +
               jnp.where(at0 & (lane == 4), prog_p, 0.0) +
               jnp.where(at0 & (lane == 5), corr_p, 0.0) +
               jnp.where(at0 & (lane == 6), corr2_p, 0.0))
        out_ref[...] += acc

    return kernel


def _pick_tiling(n_st, n_t, groups, tm):
    if groups is None:
        groups = 2 if n_st >= 16 else 1          # engage both TCs on v7x
    rows_per_group = -(-n_st // groups)
    rows_per_group = ((rows_per_group + 7) // 8) * 8
    if tm is None:
        # double-buffered (W row tile + pred + targ) must fit the smallest default
        # scoped VMEM (v5e: 16 MiB; v7x physical 64 MiB) -> ~12 MiB working target
        budget = 12 << 20
        bytes_per_row = 4 * (n_st + 2 * n_t) * 2
        tm = max(8, min(256, (budget // max(bytes_per_row, 1)) // 8 * 8))
    tm = int(max(8, min(tm, rows_per_group) // 8 * 8))
    r_steps = -(-rows_per_group // tm)
    n_pad = groups * r_steps * tm
    return groups, tm, r_steps, n_pad


@functools.partial(jax.jit, static_argnames=("tm", "groups"))
def improved_spatial_loss(predicted, target, seasonal_amplitudes,
                          seasonal_phases, dense_neighbor_weights,
                          *, tm=None, groups=None):
    """Pallas implementation of ImprovedSpatialLoss.forward."""
    n_st, n_t = predicted.shape
    groups, tm, r_steps, n_pad = _pick_tiling(n_st, n_t, groups, tm)

    pred, targ = predicted, target
    amps, phases, W = seasonal_amplitudes, seasonal_phases, dense_neighbor_weights
    if n_pad != n_st:                              # station-row pad only if needed
        rp = n_pad - n_st
        pred = jnp.pad(pred, ((0, rp), (0, 0)))
        targ = jnp.pad(targ, ((0, rp), (0, 0)))
        amps = jnp.pad(amps, ((0, rp), (0, 0)))
        phases = jnp.pad(phases, ((0, rp), (0, 0)))
        W = jnp.pad(W, ((0, rp), (0, rp)))

    cost = pl.CostEstimate(
        flops=int(2 * n_pad * n_pad * 16 + 16 * n_pad * n_t),
        transcendentals=int(groups * 8 * n_pad + n_pad),
        bytes_accessed=int(4 * (n_pad * n_pad + 2 * n_pad * n_t + 8 * n_pad)
                           + groups * 8 * 128 * 4))

    out = pl.pallas_call(
        _make_loss_kernel(n_st, tm, r_steps, n_t),
        out_shape=jax.ShapeDtypeStruct((groups, 8, 128), jnp.float32),
        grid_spec=pltpu.PrefetchScalarGridSpec(
            num_scalar_prefetch=0,
            grid=(groups, r_steps),
            in_specs=[
                pl.BlockSpec((tm, n_t), lambda g, r: (g * r_steps + r, 0)),
                pl.BlockSpec((tm, n_t), lambda g, r: (g * r_steps + r, 0)),
                pl.BlockSpec((tm, n_pad), lambda g, r: (g * r_steps + r, 0)),
                pl.BlockSpec((n_pad, 4), lambda g, r: (0, 0)),
                pl.BlockSpec((n_pad, 4), lambda g, r: (0, 0)),
            ],
            out_specs=pl.BlockSpec((1, 8, 128), lambda g, r: (g, 0, 0)),
            scratch_shapes=[pltpu.VMEM((n_pad, 16), jnp.float32)]),
        compiler_params=pltpu.CompilerParams(
            dimension_semantics=("parallel", "arbitrary")),
        cost_estimate=cost,
    )(pred, targ, W, amps, phases)

    parts = jnp.sum(out[:, 0, :8], axis=0)         # combine per-group partial rows
    huber_sum, spatial_sum = parts[0], parts[1]
    ampmax_sum, annual_sum, prog_sum = parts[2], parts[3], parts[4]
    corr_sum, corr_sq = parts[5], parts[6]

    primary = huber_sum / (n_st * n_t)
    spatial = spatial_sum / (n_st * 4)
    physics = (ampmax_sum + annual_sum + 0.1 * prog_sum) / n_st
    mean_cl = corr_sum / n_st
    var_den = (n_st - 1) if n_st > 1 else 1
    var_cl = jnp.maximum(corr_sq - n_st * mean_cl * mean_cl, 0.0) / var_den
    correlation = mean_cl + 0.1 * var_cl

    total = (primary + ALPHA_SPATIAL * spatial +
             ALPHA_PHYSICS * physics + ALPHA_CORRELATION * correlation)
    components = {"primary": primary, "spatial": spatial,
                  "physics": physics, "correlation": correlation}
    return total, components


# ----------------------------------------------------------------------------
# Glue: deterministic neighbor graph (mirrors _build_enhanced_neighbor_graph).
# ----------------------------------------------------------------------------
def build_neighbor_graph(coords, n_neighbors):
    diff = coords[:, None, :] - coords[None, :, :]
    dist = np.sqrt(np.sum(diff ** 2, axis=-1))
    order = np.argsort(dist, axis=1)
    idx = order[:, 1:n_neighbors + 1]                     # skip self
    d = np.take_along_axis(dist, idx, axis=1)
    local = np.exp(-d / (np.mean(d, axis=1, keepdims=True) * 0.5))
    regional = 1.0 / (d + np.mean(d) * 0.1)
    combined = 0.7 * local + 0.3 * regional
    w = combined / (np.sum(combined, axis=1, keepdims=True) + 1e-6)
    return idx.astype(np.int32), w.astype(np.float32)


def densify_weights(idx, w, n_stations):
    W = np.zeros((n_stations, n_stations), np.float32)
    rows = np.repeat(np.arange(n_stations), idx.shape[1])
    W[rows, idx.reshape(-1)] = w.reshape(-1)
    return W


# ----------------------------------------------------------------------------
# Pure-JAX reference (direct transcription of the PyTorch math) for validation.
# ----------------------------------------------------------------------------
def reference_loss(pred, targ, amps, phases, nbr_idx, nbr_w):
    n_st, n_t = pred.shape
    d = pred - targ
    ad = jnp.abs(d)
    primary = jnp.mean(jnp.where(ad < 1.0, 0.5 * d * d, ad - 0.5))

    na = amps[nbr_idx]                       # (N,K,4)
    nph = phases[nbr_idx]
    w3 = nbr_w[:, :, None]
    wmean = jnp.sum(na * w3, axis=1)
    amp_pen = (amps - wmean) ** 2
    phase_pen = jnp.sum(w3 * jnp.sin(nph - phases[:, None, :]) ** 2, axis=1)
    comp = jnp.sum(amp_pen + 0.5 * phase_pen, axis=0)
    coef = jnp.array([1.0, 1.0, 1.5, 1.0], jnp.float32)
    spatial = jnp.sum(comp * coef) / (n_st * 4)

    tot_amp = jnp.sum(amps, axis=1)
    amp_penalty = jnp.mean(jnp.maximum(tot_amp - 100.0, 0.0))
    annual = amps[:, 2]
    max_other = jnp.max(jnp.stack([amps[:, 0], amps[:, 1], amps[:, 3]], 1), 1)
    annual_dom = jnp.mean(jnp.maximum(max_other - annual, 0.0))
    prog = jnp.mean(jnp.maximum(amps[:, 0] - amps[:, 1], 0.0) +
                    jnp.maximum(amps[:, 1] - amps[:, 2], 0.0))
    physics = amp_penalty + annual_dom + 0.1 * prog

    pc = pred - jnp.mean(pred, axis=1, keepdims=True)
    tc = targ - jnp.mean(targ, axis=1, keepdims=True)
    num = jnp.sum(pc * tc, axis=1)
    den = jnp.sqrt(jnp.sum(pc * pc, axis=1) * jnp.sum(tc * tc, axis=1))
    cl = jnp.where(den > 1e-8, 1.0 - num / jnp.where(den > 1e-8, den, 1.0), 1.0)
    correlation = jnp.mean(cl) + 0.1 * jnp.var(cl, ddof=1)

    total = (primary + ALPHA_SPATIAL * spatial + ALPHA_PHYSICS * physics +
             ALPHA_CORRELATION * correlation)
    return total, primary, spatial, physics, correlation


if __name__ == "__main__":
    N_STATIONS, N_TIMEPOINTS, N_NEIGHBORS = 32, 64, 8

    key = jax.random.PRNGKey(0)
    k_coord, k_phase, k_pred, k_targ = jax.random.split(key, 4)

    coords = np.asarray(jax.random.uniform(k_coord, (N_STATIONS, 2)) * 100.0,
                        dtype=np.float64)
    nbr_idx_np, nbr_w_np = build_neighbor_graph(coords, N_NEIGHBORS)
    W_dense = jnp.asarray(densify_weights(nbr_idx_np, nbr_w_np, N_STATIONS))

    # parameters per ImprovedSpatialInSARModel.__init__
    seasonal_amplitudes = jnp.ones((N_STATIONS, 4), jnp.float32) * 4.0
    seasonal_phases = jax.random.uniform(k_phase, (N_STATIONS, 4),
                                         jnp.float32) * 2.0 * np.pi

    predicted = jax.random.normal(k_pred, (N_STATIONS, N_TIMEPOINTS),
                                  jnp.float32) * 5.0
    target = jax.random.normal(k_targ, (N_STATIONS, N_TIMEPOINTS),
                               jnp.float32) * 5.0

    total, comps = improved_spatial_loss(predicted, target,
                                         seasonal_amplitudes, seasonal_phases,
                                         W_dense)
    jax.block_until_ready(total)

    # validate against the direct (gather-based) transcription of the PyTorch math
    ref = reference_loss(predicted, target, seasonal_amplitudes,
                         seasonal_phases, jnp.asarray(nbr_idx_np),
                         jnp.asarray(nbr_w_np))
    got = (total, comps["primary"], comps["spatial"], comps["physics"],
           comps["correlation"])
    for a, b in zip(got, ref):
        assert np.allclose(np.asarray(a), np.asarray(b), rtol=2e-3, atol=2e-4)

    print("KERNEL_OK")
</pallas_src>

<mosaic_0001>
module attributes {stable_mosaic.version = 11 : i64} {
  func.func @kernel(%arg0: i32, %arg1: i32, %arg2: memref<16x64xf32, #tpu.memory_space<vmem>>, %arg3: memref<16x64xf32, #tpu.memory_space<vmem>>, %arg4: memref<16x32xf32, #tpu.memory_space<vmem>>, %arg5: memref<32x4xf32, #tpu.memory_space<vmem>>, %arg6: memref<32x4xf32, #tpu.memory_space<vmem>>, %arg7: memref<1x8x128xf32, #tpu.memory_space<vmem>>, %arg8: memref<32x16xf32, #tpu.memory_space<vmem>>) attributes {dimension_semantics = [#tpu.dimension_semantics<parallel>, #tpu.dimension_semantics<arbitrary>], iteration_bounds = array<i64: 2, 1>, scalar_prefetch = 0 : i64, scratch_operands = 1 : i64, tpu.core_type = #tpu.core_type<tc>, window_params = [{transform_indices = @transform_0, window_bounds = array<i64: 16, 64>}, {transform_indices = @transform_1, window_bounds = array<i64: 16, 64>}, {transform_indices = @transform_2, window_bounds = array<i64: 16, 32>}, {pipeline_mode = #tpu.pipeline_mode<synchronous>, transform_indices = @transform_3, window_bounds = array<i64: 32, 4>}, {pipeline_mode = #tpu.pipeline_mode<synchronous>, transform_indices = @transform_4, window_bounds = array<i64: 32, 4>}, {transform_indices = @transform_5, window_bounds = array<i64: 1, 8, 128>}]} {
    %c0_i32 = arith.constant 0 : i32
    %0 = arith.cmpi eq, %arg1, %c0_i32 : i32
    %1 = arith.extui %0 : i1 to i32
    %c0_i32_0 = arith.constant 0 : i32
    %2 = arith.cmpi ne, %1, %c0_i32_0 : i32
    scf.if %2 {
      %c0_65 = arith.constant 0 : index
      %c0_66 = arith.constant 0 : index
      %225 = vector.load %arg5[%c0_65, %c0_66] : memref<32x4xf32, #tpu.memory_space<vmem>>, vector<32x4xf32>
      %c0_67 = arith.constant 0 : index
      %c0_68 = arith.constant 0 : index
      %226 = vector.load %arg6[%c0_67, %c0_68] : memref<32x4xf32, #tpu.memory_space<vmem>>, vector<32x4xf32>
      %227 = math.sin %226 : vector<32x4xf32>
      %228 = math.cos %226 : vector<32x4xf32>
      %229 = arith.mulf %227, %227 : vector<32x4xf32>
      %230 = arith.mulf %227, %228 : vector<32x4xf32>
      %231 = arith.mulf %228, %228 : vector<32x4xf32>
      %232 = tpu.concatenate %225, %229, %230, %231 in 1 : vector<32x4xf32>, vector<32x4xf32>, vector<32x4xf32>, vector<32x4xf32> -> vector<32x16xf32>
      %c0_69 = arith.constant 0 : index
      %c0_70 = arith.constant 0 : index
      %233 = vector.load %arg8[%c0_69, %c0_70] : memref<32x16xf32, #tpu.memory_space<vmem>>, vector<32x16xf32>
      tpu.vector_store %arg8[%c0_69, %c0_70], %232 {strides = array<i32>} : memref<32x16xf32, #tpu.memory_space<vmem>>, vector<32x16xf32>,
      %cst_71 = arith.constant 0.000000e+00 : f32
      %234 = vector.broadcast %cst_71 : f32 to vector<1x8x128xf32>
      %c0_72 = arith.constant 0 : index
      %c0_73 = arith.constant 0 : index
      %c0_74 = arith.constant 0 : index
      %235 = vector.load %arg7[%c0_72, %c0_73, %c0_74] : memref<1x8x128xf32, #tpu.memory_space<vmem>>, vector<1x8x128xf32>
      tpu.vector_store %arg7[%c0_72, %c0_73, %c0_74], %234 {strides = array<i32>} : memref<1x8x128xf32, #tpu.memory_space<vmem>>, vector<1x8x128xf32>,
    } else {
    }
    %c0 = arith.constant 0 : index
    %c0_1 = arith.constant 0 : index
    %3 = vector.load %arg2[%c0, %c0_1] : memref<16x64xf32, #tpu.memory_space<vmem>>, vector<16x64xf32>
    %c0_2 = arith.constant 0 : index
    %c0_3 = arith.constant 0 : index
    %4 = vector.load %arg3[%c0_2, %c0_3] : memref<16x64xf32, #tpu.memory_space<vmem>>, vector<16x64xf32>
    %c0_4 = arith.constant 0 : index
    %c0_5 = arith.constant 0 : index
    %5 = vector.load %arg4[%c0_4, %c0_5] : memref<16x32xf32, #tpu.memory_space<vmem>>, vector<16x32xf32>
    %6 = arith.subf %3, %4 : vector<16x64xf32>
    %7 = math.absf %6 : vector<16x64xf32>
    %cst = arith.constant 1.000000e+00 : f32
    %8 = vector.broadcast %cst : f32 to vector<16x64xf32>
    %9 = arith.cmpf olt, %7, %8 : vector<16x64xf32>
    %cst_6 = arith.constant 5.000000e-01 : f32
    %10 = vector.broadcast %cst_6 : f32 to vector<16x64xf32>
    %11 = arith.mulf %10, %6 : vector<16x64xf32>
    %12 = arith.mulf %11, %6 : vector<16x64xf32>
    %cst_7 = arith.constant 5.000000e-01 : f32
    %13 = vector.broadcast %cst_7 : f32 to vector<16x64xf32>
    %14 = arith.subf %7, %13 : vector<16x64xf32>
    %15 = arith.select %9, %12, %14 : vector<16x64xi1>, vector<16x64xf32>
    %16 = vector.shape_cast %15 : vector<16x64xf32> to vector<1x16x64xf32>
    %cst_8 = arith.constant dense<0.000000e+00> : vector<1xf32>
    %17 = vector.multi_reduction <add>, %16, %cst_8 [1, 2] : vector<1x16x64xf32> to vector<1xf32>
    %18 = vector.shape_cast %17 : vector<1xf32> to vector<1x1x1xf32>
    %19 = vector.extract %18[0, 0, 0] : f32 from vector<1x1x1xf32>
    %20 = vector.broadcast %19 : f32 to vector<1x1xf32>
    %cst_9 = arith.constant dense<0.000000e+00> : vector<16xf32>
    %21 = vector.multi_reduction <add>, %3, %cst_9 [1] : vector<16x64xf32> to vector<16xf32>
    %22 = vector.shape_cast %21 : vector<16xf32> to vector<16x1xf32>
    %cst_10 = arith.constant dense<0.000000e+00> : vector<16xf32>
    %23 = vector.multi_reduction <add>, %4, %cst_10 [1] : vector<16x64xf32> to vector<16xf32>
    %24 = vector.shape_cast %23 : vector<16xf32> to vector<16x1xf32>
    %25 = arith.mulf %3, %4 : vector<16x64xf32>
    %cst_11 = arith.constant dense<0.000000e+00> : vector<16xf32>
    %26 = vector.multi_reduction <add>, %25, %cst_11 [1] : vector<16x64xf32> to vector<16xf32>
    %27 = vector.shape_cast %26 : vector<16xf32> to vector<16x1xf32>
    %28 = arith.mulf %3, %3 : vector<16x64xf32>
    %cst_12 = arith.constant dense<0.000000e+00> : vector<16xf32>
    %29 = vector.multi_reduction <add>, %28, %cst_12 [1] : vector<16x64xf32> to vector<16xf32>
    %30 = vector.shape_cast %29 : vector<16xf32> to vector<16x1xf32>
    %31 = arith.mulf %4, %4 : vector<16x64xf32>
    %cst_13 = arith.constant dense<0.000000e+00> : vector<16xf32>
    %32 = vector.multi_reduction <add>, %31, %cst_13 [1] : vector<16x64xf32> to vector<16xf32>
    %33 = vector.shape_cast %32 : vector<16xf32> to vector<16x1xf32>
    %34 = arith.mulf %22, %24 : vector<16x1xf32>
    %cst_14 = arith.constant 1.562500e-02 : f32
    %35 = vector.broadcast %cst_14 : f32 to vector<16x1xf32>
    %36 = arith.mulf %34, %35 : vector<16x1xf32>
    %37 = arith.subf %27, %36 : vector<16x1xf32>
    %38 = arith.mulf %22, %22 : vector<16x1xf32>
    %cst_15 = arith.constant 1.562500e-02 : f32
    %39 = vector.broadcast %cst_15 : f32 to vector<16x1xf32>
    %40 = arith.mulf %38, %39 : vector<16x1xf32>
    %41 = arith.subf %30, %40 : vector<16x1xf32>
    %cst_16 = arith.constant 0.000000e+00 : f32
    %42 = vector.broadcast %cst_16 : f32 to vector<16x1xf32>
    %43 = arith.maximumf %41, %42 : vector<16x1xf32>
    %44 = arith.mulf %24, %24 : vector<16x1xf32>
    %cst_17 = arith.constant 1.562500e-02 : f32
    %45 = vector.broadcast %cst_17 : f32 to vector<16x1xf32>
    %46 = arith.mulf %44, %45 : vector<16x1xf32>
    %47 = arith.subf %33, %46 : vector<16x1xf32>
    %cst_18 = arith.constant 0.000000e+00 : f32
    %48 = vector.broadcast %cst_18 : f32 to vector<16x1xf32>
    %49 = arith.maximumf %47, %48 : vector<16x1xf32>
    %50 = arith.mulf %43, %49 : vector<16x1xf32>
    %51 = math.sqrt %50 : vector<16x1xf32>
    %cst_19 = arith.constant 9.99999993E-9 : f32
    %52 = vector.broadcast %cst_19 : f32 to vector<16x1xf32>
    %53 = arith.cmpf ogt, %51, %52 : vector<16x1xf32>
    %cst_20 = arith.constant 1.000000e+00 : f32
    %54 = vector.broadcast %cst_20 : f32 to vector<16x1xf32>
    %55 = arith.select %53, %51, %54 : vector<16x1xi1>, vector<16x1xf32>
    %56 = arith.divf %37, %55 : vector<16x1xf32>
    %cst_21 = arith.constant 1.000000e+00 : f32
    %57 = vector.broadcast %cst_21 : f32 to vector<16x1xf32>
    %58 = arith.subf %57, %56 : vector<16x1xf32>
    %cst_22 = arith.constant 1.000000e+00 : f32
    %59 = vector.broadcast %cst_22 : f32 to vector<16x1xf32>
    %60 = arith.select %53, %58, %59 : vector<16x1xi1>, vector<16x1xf32>
    %c1_i32 = arith.constant 1 : i32
    %61 = arith.muli %arg0, %c1_i32 : i32
    %62 = arith.addi %61, %arg1 : i32
    %c16_i32 = arith.constant 16 : i32
    %63 = arith.muli %62, %c16_i32 : i32
    %64 = tpu.iota {dimensions = array<i32: 0>} : vector<16x1xi32>
    %65 = vector.broadcast %63 : i32 to vector<16x1xi32>
    %66 = arith.addi %65, %64 : vector<16x1xi32>
    %c32_i32 = arith.constant 32 : i32
    %67 = vector.broadcast %c32_i32 : i32 to vector<16x1xi32>
    %68 = arith.cmpi slt, %66, %67 : vector<16x1xi32>
    %cst_23 = arith.constant 0.000000e+00 : f32
    %69 = vector.broadcast %cst_23 : f32 to vector<16x1xf32>
    %70 = arith.select %68, %60, %69 : vector<16x1xi1>, vector<16x1xf32>
    %71 = vector.shape_cast %70 : vector<16x1xf32> to vector<1x16x1xf32>
    %cst_24 = arith.constant dense<0.000000e+00> : vector<1xf32>
    %72 = vector.multi_reduction <add>, %71, %cst_24 [1, 2] : vector<1x16x1xf32> to vector<1xf32>
    %73 = vector.shape_cast %72 : vector<1xf32> to vector<1x1x1xf32>
    %74 = vector.extract %73[0, 0, 0] : f32 from vector<1x1x1xf32>
    %75 = vector.broadcast %74 : f32 to vector<1x1xf32>
    %76 = arith.mulf %70, %70 : vector<16x1xf32>
    %77 = vector.shape_cast %76 : vector<16x1xf32> to vector<1x16x1xf32>
    %cst_25 = arith.constant dense<0.000000e+00> : vector<1xf32>
    %78 = vector.multi_reduction <add>, %77, %cst_25 [1, 2] : vector<1x16x1xf32> to vector<1xf32>
    %79 = vector.shape_cast %78 : vector<1xf32> to vector<1x1x1xf32>
    %80 = vector.extract %79[0, 0, 0] : f32 from vector<1x1x1xf32>
    %81 = vector.broadcast %80 : f32 to vector<1x1xf32>
    %c0_26 = arith.constant 0 : index
    %c0_27 = arith.constant 0 : index
    %82 = vector.load %arg8[%c0_26, %c0_27] : memref<32x16xf32, #tpu.memory_space<vmem>>, vector<32x16xf32>
    %cst_28 = arith.constant dense<0.000000e+00> : vector<16x16xf32>
    %83 = tpu.matmul %5, %82, %cst_28 {dimension_numbers = #tpu.dot_dimension_numbers<[1], [0], [0], [1], [0, 0, 1, 1], [], []>} : vector<16x32xf32>, vector<32x16xf32>, vector<16x16xf32> -> vector<16x16xf32>
    %84 = tpu.assume_multiple %63, 16 : i32
    %85 = arith.index_cast %84 : i32 to index
    %c0_29 = arith.constant 0 : index
    %86 = vector.load %arg8[%85, %c0_29] : memref<32x16xf32, #tpu.memory_space<vmem>>, vector<16x16xf32>
    %87 = vector.extract_strided_slice %86 {offsets = [0, 0], sizes = [16, 4], strides = [1, 1]} : vector<16x16xf32> to vector<16x4xf32>
    %88 = vector.extract_strided_slice %86 {offsets = [0, 4], sizes = [16, 4], strides = [1, 1]} : vector<16x16xf32> to vector<16x4xf32>
    %89 = vector.extract_strided_slice %86 {offsets = [0, 8], sizes = [16, 4], strides = [1, 1]} : vector<16x16xf32> to vector<16x4xf32>
    %90 = vector.extract_strided_slice %86 {offsets = [0, 12], sizes = [16, 4], strides = [1, 1]} : vector<16x16xf32> to vector<16x4xf32>
    %91 = vector.extract_strided_slice %83 {offsets = [0, 0], sizes = [16, 4], strides = [1, 1]} : vector<16x16xf32> to vector<16x4xf32>
    %92 = arith.subf %87, %91 : vector<16x4xf32>
    %93 = arith.mulf %92, %92 : vector<16x4xf32>
    %94 = vector.extract_strided_slice %83 {offsets = [0, 4], sizes = [16, 4], strides = [1, 1]} : vector<16x16xf32> to vector<16x4xf32>
    %95 = arith.mulf %90, %94 : vector<16x4xf32>
    %cst_30 = arith.constant 2.000000e+00 : f32
    %96 = vector.broadcast %cst_30 : f32 to vector<16x4xf32>
    %97 = arith.mulf %96, %89 : vector<16x4xf32>
    %98 = vector.extract_strided_slice %83 {offsets = [0, 8], sizes = [16, 4], strides = [1, 1]} : vector<16x16xf32> to vector<16x4xf32>
    %99 = arith.mulf %97, %98 : vector<16x4xf32>
    %100 = arith.subf %95, %99 : vector<16x4xf32>
    %101 = vector.extract_strided_slice %83 {offsets = [0, 12], sizes = [16, 4], strides = [1, 1]} : vector<16x16xf32> to vector<16x4xf32>
    %102 = arith.mulf %88, %101 : vector<16x4xf32>
    %103 = arith.addf %100, %102 : vector<16x4xf32>
    %cst_31 = arith.constant 0.000000e+00 : f32
    %104 = vector.broadcast %cst_31 : f32 to vector<16x4xf32>
    %105 = arith.maximumf %103, %104 : vector<16x4xf32>
    %106 = tpu.iota {dimensions = array<i32: 1>} : vector<16x4xi32>
    %c2_i32 = arith.constant 2 : i32
    %107 = vector.broadcast %c2_i32 : i32 to vector<16x4xi32>
    %108 = arith.cmpi eq, %106, %107 : vector<16x4xi32>
    %cst_32 = arith.constant 1.500000e+00 : f32
    %cst_33 = arith.constant 1.000000e+00 : f32
    %109 = vector.broadcast %cst_32 : f32 to vector<16x4xf32>
    %110 = vector.broadcast %cst_33 : f32 to vector<16x4xf32>
    %111 = arith.select %108, %109, %110 : vector<16x4xi1>, vector<16x4xf32>
    %cst_34 = arith.constant 5.000000e-01 : f32
    %112 = vector.broadcast %cst_34 : f32 to vector<16x4xf32>
    %113 = arith.mulf %112, %105 : vector<16x4xf32>
    %114 = arith.addf %93, %113 : vector<16x4xf32>
    %115 = arith.mulf %114, %111 : vector<16x4xf32>
    %116 = vector.shape_cast %115 : vector<16x4xf32> to vector<1x16x4xf32>
    %cst_35 = arith.constant dense<0.000000e+00> : vector<1xf32>
    %117 = vector.multi_reduction <add>, %116, %cst_35 [1, 2] : vector<1x16x4xf32> to vector<1xf32>
    %118 = vector.shape_cast %117 : vector<1xf32> to vector<1x1x1xf32>
    %119 = vector.extract %118[0, 0, 0] : f32 from vector<1x1x1xf32>
    %120 = vector.broadcast %119 : f32 to vector<1x1xf32>
    %cst_36 = arith.constant dense<0.000000e+00> : vector<16xf32>
    %121 = vector.multi_reduction <add>, %87, %cst_36 [1] : vector<16x4xf32> to vector<16xf32>
    %122 = vector.shape_cast %121 : vector<16xf32> to vector<16x1xf32>
    %cst_37 = arith.constant 1.000000e+02 : f32
    %123 = vector.broadcast %cst_37 : f32 to vector<16x1xf32>
    %124 = arith.subf %122, %123 : vector<16x1xf32>
    %cst_38 = arith.constant 0.000000e+00 : f32
    %125 = vector.broadcast %cst_38 : f32 to vector<16x1xf32>
    %126 = arith.maximumf %124, %125 : vector<16x1xf32>
    %127 = vector.shape_cast %126 : vector<16x1xf32> to vector<1x16x1xf32>
    %cst_39 = arith.constant dense<0.000000e+00> : vector<1xf32>
    %128 = vector.multi_reduction <add>, %127, %cst_39 [1, 2] : vector<1x16x1xf32> to vector<1xf32>
    %129 = vector.shape_cast %128 : vector<1xf32> to vector<1x1x1xf32>
    %130 = vector.extract %129[0, 0, 0] : f32 from vector<1x1x1xf32>
    %131 = vector.broadcast %130 : f32 to vector<1x1xf32>
    %132 = vector.extract_strided_slice %87 {offsets = [0, 2], sizes = [16, 1], strides = [1, 1]} : vector<16x4xf32> to vector<16x1xf32>
    %c2_i32_40 = arith.constant 2 : i32
    %133 = vector.broadcast %c2_i32_40 : i32 to vector<16x4xi32>
    %134 = arith.cmpi eq, %106, %133 : vector<16x4xi32>
    %cst_41 = arith.constant 0xFF800000 : f32
    %135 = vector.broadcast %cst_41 : f32 to vector<16x4xf32>
    %136 = arith.select %134, %135, %87 : vector<16x4xi1>, vector<16x4xf32>
    %cst_42 = arith.constant dense<0xFF800000> : vector<16xf32>
    %137 = vector.multi_reduction <maximumf>, %136, %cst_42 [1] : vector<16x4xf32> to vector<16xf32>
    %138 = vector.shape_cast %137 : vector<16xf32> to vector<16x1xf32>
    %139 = arith.subf %138, %132 : vector<16x1xf32>
    %cst_43 = arith.constant 0.000000e+00 : f32
    %140 = vector.broadcast %cst_43 : f32 to vector<16x1xf32>
    %141 = arith.maximumf %139, %140 : vector<16x1xf32>
    %142 = vector.shape_cast %141 : vector<16x1xf32> to vector<1x16x1xf32>
    %cst_44 = arith.constant dense<0.000000e+00> : vector<1xf32>
    %143 = vector.multi_reduction <add>, %142, %cst_44 [1, 2] : vector<1x16x1xf32> to vector<1xf32>
    %144 = vector.shape_cast %143 : vector<1xf32> to vector<1x1x1xf32>
    %145 = vector.extract %144[0, 0, 0] : f32 from vector<1x1x1xf32>
    %146 = vector.broadcast %145 : f32 to vector<1x1xf32>
    %147 = vector.extract_strided_slice %87 {offsets = [0, 0], sizes = [16, 1], strides = [1, 1]} : vector<16x4xf32> to vector<16x1xf32>
    %148 = vector.extract_strided_slice %87 {offsets = [0, 1], sizes = [16, 1], strides = [1, 1]} : vector<16x4xf32> to vector<16x1xf32>
    %149 = arith.subf %147, %148 : vector<16x1xf32>
    %cst_45 = arith.constant 0.000000e+00 : f32
    %150 = vector.broadcast %cst_45 : f32 to vector<16x1xf32>
    %151 = arith.maximumf %149, %150 : vector<16x1xf32>
    %152 = vector.extract_strided_slice %87 {offsets = [0, 1], sizes = [16, 1], strides = [1, 1]} : vector<16x4xf32> to vector<16x1xf32>
    %153 = vector.extract_strided_slice %87 {offsets = [0, 2], sizes = [16, 1], strides = [1, 1]} : vector<16x4xf32> to vector<16x1xf32>
    %154 = arith.subf %152, %153 : vector<16x1xf32>
    %cst_46 = arith.constant 0.000000e+00 : f32
    %155 = vector.broadcast %cst_46 : f32 to vector<16x1xf32>
    %156 = arith.maximumf %154, %155 : vector<16x1xf32>
    %157 = arith.addf %151, %156 : vector<16x1xf32>
    %158 = vector.shape_cast %157 : vector<16x1xf32> to vector<1x16x1xf32>
    %cst_47 = arith.constant dense<0.000000e+00> : vector<1xf32>
    %159 = vector.multi_reduction <add>, %158, %cst_47 [1, 2] : vector<1x16x1xf32> to vector<1xf32>
    %160 = vector.shape_cast %159 : vector<1xf32> to vector<1x1x1xf32>
    %161 = vector.extract %160[0, 0, 0] : f32 from vector<1x1x1xf32>
    %162 = vector.broadcast %161 : f32 to vector<1x1xf32>
    %163 = tpu.iota {dimensions = array<i32: 1>} : vector<1x8x128xi32>
    %164 = tpu.iota {dimensions = array<i32: 2>} : vector<1x8x128xi32>
    %c0_i32_48 = arith.constant 0 : i32
    %165 = vector.broadcast %c0_i32_48 : i32 to vector<1x8x128xi32>
    %166 = arith.cmpi eq, %163, %165 : vector<1x8x128xi32>
    %c0_i32_49 = arith.constant 0 : i32
    %167 = vector.broadcast %c0_i32_49 : i32 to vector<1x8x128xi32>
    %168 = arith.cmpi eq, %164, %167 : vector<1x8x128xi32>
    %169 = arith.andi %166, %168 : vector<1x8x128xi1>
    %cst_50 = arith.constant 0.000000e+00 : f32
    %170 = vector.shape_cast %20 : vector<1x1xf32> to vector<1x1x1xf32>
    %171 = vector.broadcast %170 : vector<1x1x1xf32> to vector<1x8x128xf32>
    %172 = vector.broadcast %cst_50 : f32 to vector<1x8x128xf32>
    %173 = arith.select %169, %171, %172 : vector<1x8x128xi1>, vector<1x8x128xf32>
    %c1_i32_51 = arith.constant 1 : i32
    %174 = vector.broadcast %c1_i32_51 : i32 to vector<1x8x128xi32>
    %175 = arith.cmpi eq, %164, %174 : vector<1x8x128xi32>
    %176 = arith.andi %166, %175 : vector<1x8x128xi1>
    %cst_52 = arith.constant 0.000000e+00 : f32
    %177 = vector.shape_cast %120 : vector<1x1xf32> to vector<1x1x1xf32>
    %178 = vector.broadcast %177 : vector<1x1x1xf32> to vector<1x8x128xf32>
    %179 = vector.broadcast %cst_52 : f32 to vector<1x8x128xf32>
    %180 = arith.select %176, %178, %179 : vector<1x8x128xi1>, vector<1x8x128xf32>
    %181 = arith.addf %173, %180 : vector<1x8x128xf32>
    %c2_i32_53 = arith.constant 2 : i32
    %182 = vector.broadcast %c2_i32_53 : i32 to vector<1x8x128xi32>
    %183 = arith.cmpi eq, %164, %182 : vector<1x8x128xi32>
    %184 = arith.andi %166, %183 : vector<1x8x128xi1>
    %cst_54 = arith.constant 0.000000e+00 : f32
    %185 = vector.shape_cast %131 : vector<1x1xf32> to vector<1x1x1xf32>
    %186 = vector.broadcast %185 : vector<1x1x1xf32> to vector<1x8x128xf32>
    %187 = vector.broadcast %cst_54 : f32 to vector<1x8x128xf32>
    %188 = arith.select %184, %186, %187 : vector<1x8x128xi1>, vector<1x8x128xf32>
    %189 = arith.addf %181, %188 : vector<1x8x128xf32>
    %c3_i32 = arith.constant 3 : i32
    %190 = vector.broadcast %c3_i32 : i32 to vector<1x8x128xi32>
    %191 = arith.cmpi eq, %164, %190 : vector<1x8x128xi32>
    %192 = arith.andi %166, %191 : vector<1x8x128xi1>
    %cst_55 = arith.constant 0.000000e+00 : f32
    %193 = vector.shape_cast %146 : vector<1x1xf32> to vector<1x1x1xf32>
    %194 = vector.broadcast %193 : vector<1x1x1xf32> to vector<1x8x128xf32>
    %195 = vector.broadcast %cst_55 : f32 to vector<1x8x128xf32>
    %196 = arith.select %192, %194, %195 : vector<1x8x128xi1>, vector<1x8x128xf32>
    %197 = arith.addf %189, %196 : vector<1x8x128xf32>
    %c4_i32 = arith.constant 4 : i32
    %198 = vector.broadcast %c4_i32 : i32 to vector<1x8x128xi32>
    %199 = arith.cmpi eq, %164, %198 : vector<1x8x128xi32>
    %200 = arith.andi %166, %199 : vector<1x8x128xi1>
    %cst_56 = arith.constant 0.000000e+00 : f32
    %201 = vector.shape_cast %162 : vector<1x1xf32> to vector<1x1x1xf32>
    %202 = vector.broadcast %201 : vector<1x1x1xf32> to vector<1x8x128xf32>
    %203 = vector.broadcast %cst_56 : f32 to vector<1x8x128xf32>
    %204 = arith.select %200, %202, %203 : vector<1x8x128xi1>, vector<1x8x128xf32>
    %205 = arith.addf %197, %204 : vector<1x8x128xf32>
    %c5_i32 = arith.constant 5 : i32
    %206 = vector.broadcast %c5_i32 : i32 to vector<1x8x128xi32>
    %207 = arith.cmpi eq, %164, %206 : vector<1x8x128xi32>
    %208 = arith.andi %166, %207 : vector<1x8x128xi1>
    %cst_57 = arith.constant 0.000000e+00 : f32
    %209 = vector.shape_cast %75 : vector<1x1xf32> to vector<1x1x1xf32>
    %210 = vector.broadcast %209 : vector<1x1x1xf32> to vector<1x8x128xf32>
    %211 = vector.broadcast %cst_57 : f32 to vector<1x8x128xf32>
    %212 = arith.select %208, %210, %211 : vector<1x8x128xi1>, vector<1x8x128xf32>
    %213 = arith.addf %205, %212 : vector<1x8x128xf32>
    %c6_i32 = arith.constant 6 : i32
    %214 = vector.broadcast %c6_i32 : i32 to vector<1x8x128xi32>
    %215 = arith.cmpi eq, %164, %214 : vector<1x8x128xi32>
    %216 = arith.andi %166, %215 : vector<1x8x128xi1>
    %cst_58 = arith.constant 0.000000e+00 : f32
    %217 = vector.shape_cast %81 : vector<1x1xf32> to vector<1x1x1xf32>
    %218 = vector.broadcast %217 : vector<1x1x1xf32> to vector<1x8x128xf32>
    %219 = vector.broadcast %cst_58 : f32 to vector<1x8x128xf32>
    %220 = arith.select %216, %218, %219 : vector<1x8x128xi1>, vector<1x8x128xf32>
    %221 = arith.addf %213, %220 : vector<1x8x128xf32>
    %c0_59 = arith.constant 0 : index
    %c0_60 = arith.constant 0 : index
    %c0_61 = arith.constant 0 : index
    %222 = vector.load %arg7[%c0_59, %c0_60, %c0_61] : memref<1x8x128xf32, #tpu.memory_space<vmem>>, vector<1x8x128xf32>
    %223 = arith.addf %222, %221 : vector<1x8x128xf32>
    %c0_62 = arith.constant 0 : index
    %c0_63 = arith.constant 0 : index
    %c0_64 = arith.constant 0 : index
    %224 = vector.load %arg7[%c0_62, %c0_63, %c0_64] : memref<1x8x128xf32, #tpu.memory_space<vmem>>, vector<1x8x128xf32>
    tpu.vector_store %arg7[%c0_62, %c0_63, %c0_64], %223 {strides = array<i32>} : memref<1x8x128xf32, #tpu.memory_space<vmem>>, vector<1x8x128xf32>,
    return
  }
  func.func @transform_0(%arg0: i32, %arg1: i32) -> (i32, i32) {
    %c1_i32 = arith.constant 1 : i32
    %0 = arith.muli %arg0, %c1_i32 : i32
    %1 = arith.addi %0, %arg1 : i32
    %c0_i32 = arith.constant 0 : i32
    %c0_i32_0 = arith.constant 0 : i32
    return %1, %c0_i32 : i32, i32
  }
  func.func @transform_1(%arg0: i32, %arg1: i32) -> (i32, i32) {
    %c1_i32 = arith.constant 1 : i32
    %0 = arith.muli %arg0, %c1_i32 : i32
    %1 = arith.addi %0, %arg1 : i32
    %c0_i32 = arith.constant 0 : i32
    %c0_i32_0 = arith.constant 0 : i32
    return %1, %c0_i32 : i32, i32
  }
  func.func @transform_2(%arg0: i32, %arg1: i32) -> (i32, i32) {
    %c1_i32 = arith.constant 1 : i32
    %0 = arith.muli %arg0, %c1_i32 : i32
    %1 = arith.addi %0, %arg1 : i32
    %c0_i32 = arith.constant 0 : i32
    %c0_i32_0 = arith.constant 0 : i32
    return %1, %c0_i32 : i32, i32
  }
  func.func @transform_3(%arg0: i32, %arg1: i32) -> (i32, i32) {
    %c0_i32 = arith.constant 0 : i32
    %c0_i32_0 = arith.constant 0 : i32
    %c0_i32_1 = arith.constant 0 : i32
    return %c0_i32, %c0_i32_0 : i32, i32
  }
  func.func @transform_4(%arg0: i32, %arg1: i32) -> (i32, i32) {
    %c0_i32 = arith.constant 0 : i32
    %c0_i32_0 = arith.constant 0 : i32
    %c0_i32_1 = arith.constant 0 : i32
    return %c0_i32, %c0_i32_0 : i32, i32
  }
  func.func @transform_5(%arg0: i32, %arg1: i32) -> (i32, i32, i32) {
    %c0_i32 = arith.constant 0 : i32
    %c0_i32_0 = arith.constant 0 : i32
    %c0_i32_1 = arith.constant 0 : i32
    return %arg0, %c0_i32, %c0_i32_0 : i32, i32, i32
  }
}

</mosaic_0001>

<llo_original>
// kernel: improved_spatial_loss.1
$region0: #{improved_spatial_loss.1}
  #allocation0 [shape = 'u32[]', space=smem, size = 0x4, offset = 0x4, fixed_abs, tag = 'smem constant byte address 0x4 - core index']
  #allocation1 [shape = 'u32[144,128]{1,0:T(1,128)}', space=vmem, size = 0x12000, scoped, tag = 'internal scratch']
  #allocation2 [shape = 'f32[32,16]{1,0:T(8,128)}', space=vmem, size = 0x4000, scoped, tag = 'scratch operand']
  %s0 = inlined_call_operand.vmem [shape: f32[32,64], index: 0, kind: input, shape index: {}]
  %s1 = inlined_call_operand.vmem [shape: f32[32,64], index: 1, kind: input, shape index: {}]
  %s2 = inlined_call_operand.hbm [shape: f32[32,32], index: 2, kind: input, shape index: {}]
  %s3 = inlined_call_operand.vmem [shape: f32[32,4], index: 3, kind: input, shape index: {}]
  %s4 = inlined_call_operand.vmem [shape: f32[32,4], index: 4, kind: input, shape index: {}]
  %s5 = inlined_call_operand.vmem [shape: f32[2,8,128], index: 5, kind: output, shape index: {}]
  %s6 = sld [smem:[#allocation0]]
  $region61: #{improved_spatial_loss.1} parent=0
    _
  %s8 = ssub.s32 1, %s6
  %s9 = scalar_select 0, %s8, %s6
  $region1: #{improved_spatial_loss.1} parent=0
    #allocation3 [shape = 'u8[16384]{0}', space=vmem, size = 0x4000, scoped, tag = 'input window, operand 2']
    #allocation4 [shape = 's32[2]{0}', space=sflag, size = 0x8, scoped, tag = 'scoped memory for improved_spatial_loss.1']
    %10 = vsyncpa [#allocation4], 0
    %s11 = scalar_lea.sflag [#allocation4], 1
    %12 = vsyncpa %s11, 0
    loop: start=0, step=1, limit=4
    $region2: #{improved_spatial_loss.1} parent=1 // loop_pre_header
      _
    $region3: #{improved_spatial_loss.1} parent=1 // loop_header
      %s14 = sphi 0, %s18
      %p15 = scmp.ge.s32.totalorder %s14, 4
      %s21 = sphi 0, %s33
      %s22 = sphi 0, %s29
      %s23 = sphi 0, %s21
      %s24 = sphi 0, %s22
      %s25 = sphi 0, %s23
      %s26 = sphi 0, %s24
      %s38 = sphi 0, %s40
      %s41 = sphi 0, %s38
      %s42 = sphi 0, %s41
      %s58 = sphi 0, %s42
      %s66 = sphi 0, %s68
      %s69 = sphi 0, %s66
      %s70 = sphi 0, %s69
      %s86 = sphi 0, %s70
      %s94 = sphi 0, %s96
      %s97 = sphi 0, %s94
      %s98 = sphi 0, %s97
      %s114 = sphi 0, %s98
      %s118 = sphi 0, %s118
      %s120 = sphi 0, %s118
      %s121 = sphi 0, %s120
      %s135 = sphi 0, %s121
      %s139 = sphi 0, %s139
      %s141 = sphi 0, %s139
      %s142 = sphi 0, %s141
      %s156 = sphi 0, %s142
      %s162 = sphi 0, %s164
      %s165 = sphi 0, %s162
      %s166 = sphi 0, %s165
      %s182 = sphi 0, %s166
    $region4: #{improved_spatial_loss.1} parent=1 // loop_header_branch
      %17 = sbr.rel (%p15) target = $region8
    $region5: #{improved_spatial_loss.1} parent=1 // loop_body
      %s19 = ssub.s32 %s14, 1
      %s20 = ssub.s32 %s14, 2
      %s27 = sadd.s32 1, %s22
      %p28 = scmp.ge.s32.totalorder %s27, 1
      %s29 = scalar_select %p28, 0, %s27
      %s30 = sadd.s32 1, %s21
      %s31 = scalar_select %p28, %s30, %s21
      %p32 = scmp.ge.s32.totalorder %s31, 2
      %s33 = scalar_select %p32, 0, %s31
      %s34 = sadd.s32 %s21, %s22
      %s35 = sadd.s32 %s33, %s29
      %s36 = ssub.s32 %s34, %s35
      %p37 = scmp.eq.s32.totalorder %s36, 0
      %s39 = sadd.s32 %s38, 1
      %s40 = scalar_select %p37, %s38, %s39
      %p43 = pneg %p37
      %p44 = scmp.eq.s32.totalorder %s14, 1
      %p45 = por %p43, %p44
      %p46 = scmp.ne.s32.totalorder %s38, %s41
      %p47 = scmp.eq.s32.totalorder %s14, 0
      %p48 = por %p46, %p47
      %p49 = scmp.ne.s32.totalorder %s38, %s41
      %p50 = scmp.eq.s32.totalorder %s19, 1
      %p51 = por %p49, %p50
      %p52 = scmp.ne.s32.totalorder %s41, %s42
      %p53 = scmp.eq.s32.totalorder %s19, 0
      %p54 = por %p52, %p53
      %p55 = scmp.ne.s32.totalorder %s41, %s42
      %p56 = scmp.eq.s32.totalorder %s20, 1
      %p57 = por %p55, %p56
      %p59 = scmp.ne.s32.totalorder %s42, %s58
      %p60 = scmp.eq.s32.totalorder %s20, 0
      %p61 = por %p59, %p60
      %s62 = sadd.s32 %s21, %s22
      %s63 = sadd.s32 %s33, %s29
      %s64 = ssub.s32 %s62, %s63
      %p65 = scmp.eq.s32.totalorder %s64, 0
      %s67 = sadd.s32 %s66, 1
      %s68 = scalar_select %p65, %s66, %s67
      %p71 = pneg %p65
      %p72 = scmp.eq.s32.totalorder %s14, 1
      %p73 = por %p71, %p72
      %p74 = scmp.ne.s32.totalorder %s66, %s69
      %p75 = scmp.eq.s32.totalorder %s14, 0
      %p76 = por %p74, %p75
      %p77 = scmp.ne.s32.totalorder %s66, %s69
      %p78 = scmp.eq.s32.totalorder %s19, 1
      %p79 = por %p77, %p78
      %p80 = scmp.ne.s32.totalorder %s69, %s70
      %p81 = scmp.eq.s32.totalorder %s19, 0
      %p82 = por %p80, %p81
      %p83 = scmp.ne.s32.totalorder %s69, %s70
      %p84 = scmp.eq.s32.totalorder %s20, 1
      %p85 = por %p83, %p84
      %p87 = scmp.ne.s32.totalorder %s70, %s86
      %p88 = scmp.eq.s32.totalorder %s20, 0
      %p89 = por %p87, %p88
      %s90 = sadd.s32 %s21, %s22
      %s91 = sadd.s32 %s33, %s29
      %s92 = ssub.s32 %s90, %s91
      %p93 = scmp.eq.s32.totalorder %s92, 0
      %s95 = sadd.s32 %s94, 1
      %s96 = scalar_select %p93, %s94, %s95
      %p99 = pneg %p93
      %p100 = scmp.eq.s32.totalorder %s14, 1
      %p101 = por %p99, %p100
      %p102 = scmp.ne.s32.totalorder %s94, %s97
      %p103 = scmp.eq.s32.totalorder %s14, 0
      %p104 = por %p102, %p103
      %p105 = scmp.ne.s32.totalorder %s94, %s97
      %p106 = scmp.eq.s32.totalorder %s19, 1
      %p107 = por %p105, %p106
      %p108 = scmp.ne.s32.totalorder %s97, %s98
      %p109 = scmp.eq.s32.totalorder %s19, 0
      %p110 = por %p108, %p109
      %p111 = scmp.ne.s32.totalorder %s97, %s98
      %p112 = scmp.eq.s32.totalorder %s20, 1
      %p113 = por %p111, %p112
      %p115 = scmp.ne.s32.totalorder %s98, %s114
      %p116 = scmp.eq.s32.totalorder %s20, 0
      %p117 = por %p115, %p116
      %s119 = sadd.s32 %s118, 1
      %p122 = scmp.eq.s32.totalorder %s14, 1
      %p123 = scmp.ne.s32.totalorder %s118, %s120
      %p124 = scmp.eq.s32.totalorder %s14, 0
      %p125 = por %p123, %p124
      %p126 = scmp.ne.s32.totalorder %s118, %s120
      %p127 = scmp.eq.s32.totalorder %s19, 1
      %p128 = por %p126, %p127
      %p129 = scmp.ne.s32.totalorder %s120, %s121
      %p130 = scmp.eq.s32.totalorder %s19, 0
      %p131 = por %p129, %p130
      %p132 = scmp.ne.s32.totalorder %s120, %s121
      %p133 = scmp.eq.s32.totalorder %s20, 1
      %p134 = por %p132, %p133
      %p136 = scmp.ne.s32.totalorder %s121, %s135
      %p137 = scmp.eq.s32.totalorder %s20, 0
      %p138 = por %p136, %p137
      %s140 = sadd.s32 %s139, 1
      %p143 = scmp.eq.s32.totalorder %s14, 1
      %p144 = scmp.ne.s32.totalorder %s139, %s141
      %p145 = scmp.eq.s32.totalorder %s14, 0
      %p146 = por %p144, %p145
      %p147 = scmp.ne.s32.totalorder %s139, %s141
      %p148 = scmp.eq.s32.totalorder %s19, 1
      %p149 = por %p147, %p148
      %p150 = scmp.ne.s32.totalorder %s141, %s142
      %p151 = scmp.eq.s32.totalorder %s19, 0
      %p152 = por %p150, %p151
      %p153 = scmp.ne.s32.totalorder %s141, %s142
      %p154 = scmp.eq.s32.totalorder %s20, 1
      %p155 = por %p153, %p154
      %p157 = scmp.ne.s32.totalorder %s142, %s156
      %p158 = scmp.eq.s32.totalorder %s20, 0
      %p159 = por %p157, %p158
      %s160 = ssub.s32 %s21, %s33
      %p161 = scmp.eq.s32.totalorder %s160, 0
      %s163 = sadd.s32 %s162, 1
      %s164 = scalar_select %p161, %s162, %s163
      %p167 = pneg %p161
      %p168 = scmp.eq.s32.totalorder %s14, 1
      %p169 = por %p167, %p168
      %p170 = scmp.ne.s32.totalorder %s162, %s165
      %p171 = scmp.eq.s32.totalorder %s14, 0
      %p172 = por %p170, %p171
      %p173 = scmp.ne.s32.totalorder %s162, %s165
      %p174 = scmp.eq.s32.totalorder %s19, 1
      %p175 = por %p173, %p174
      %p176 = scmp.ne.s32.totalorder %s165, %s166
      %p177 = scmp.eq.s32.totalorder %s19, 0
      %p178 = por %p176, %p177
      %p179 = scmp.ne.s32.totalorder %s165, %s166
      %p180 = scmp.eq.s32.totalorder %s20, 1
      %p181 = por %p179, %p180
      %p183 = scmp.ne.s32.totalorder %s166, %s182
      %p184 = scmp.eq.s32.totalorder %s20, 0
      %p185 = por %p183, %p184
      %p186 = scmp.le.s32.totalorder 1, %s14
      %p187 = scmp.lt.s32.totalorder %s14, 3
      %p188 = pnand %p186, %p187
      %p189 = pneg %p188
      // Predicated region
      $region9: #{improved_spatial_loss.1} parent=5 // pred_check
        _
      $region10: #{improved_spatial_loss.1} parent=5 // pred_check_branch
        %191 = sbr.rel (%p188) target = $region12
      $region11: #{improved_spatial_loss.1} parent=5 // pred_region
        %s192 = ssub.s32 %s14, 1
        // Predicated region
        $region13: #{improved_spatial_loss.1} parent=11 // pred_check
          %p193 = pneg %p131
        $region14: #{improved_spatial_loss.1} parent=11 // pred_check_branch
          %195 = sbr.rel (%p193) target = $region16
        $region15: #{improved_spatial_loss.1} parent=11 // pred_region
          _
        $region16: #{improved_spatial_loss.1} parent=11 // pred_fallthru
          _
        // Predicated region
        $region17: #{improved_spatial_loss.1} parent=11 // pred_check
          %p196 = pneg %p152
        $region18: #{improved_spatial_loss.1} parent=11 // pred_check_branch
          %198 = sbr.rel (%p196) target = $region20
        $region19: #{improved_spatial_loss.1} parent=11 // pred_region
          _
        $region20: #{improved_spatial_loss.1} parent=11 // pred_fallthru
          _
      $region12: #{improved_spatial_loss.1} parent=5 // pred_fallthru
        _
      %p199 = scmp.lt.s32.totalorder %s14, 2
      // Predicated region
      $region21: #{improved_spatial_loss.1} parent=5 // pred_check
        %p200 = pneg %p199
      $region22: #{improved_spatial_loss.1} parent=5 // pred_check_branch
        %202 = sbr.rel (%p200) target = $region24
      $region23: #{improved_spatial_loss.1} parent=5 // pred_region
        // Predicated region
        $region25: #{improved_spatial_loss.1} parent=23 // pred_check
          %p203 = pneg %p48
        $region26: #{improved_spatial_loss.1} parent=23 // pred_check_branch
          %205 = sbr.rel (%p203) target = $region28
        $region27: #{improved_spatial_loss.1} parent=23 // pred_region
          %s206 = sadd.s32 %s21, %s22
          %s207 = smul.u32 2, %s206
          %p208 = scmp.lt.s32.totalorder %s207, 3
          %s209 = scalar_select %p208, %s207, 3
          %s210 = smul.addr %s209, 8
          %s211 = scalar_lea.vmem %s0, %s210
          %s212 = sadd.s32 %s21, %s22
          %s213 = smul.u32 2, %s212
        $region28: #{improved_spatial_loss.1} parent=23 // pred_fallthru
          _
        // Predicated region
        $region29: #{improved_spatial_loss.1} parent=23 // pred_check
          %p214 = pneg %p76
        $region30: #{improved_spatial_loss.1} parent=23 // pred_check_branch
          %216 = sbr.rel (%p214) target = $region32
        $region31: #{improved_spatial_loss.1} parent=23 // pred_region
          %s217 = sadd.s32 %s21, %s22
          %s218 = smul.u32 2, %s217
          %p219 = scmp.lt.s32.totalorder %s218, 3
          %s220 = scalar_select %p219, %s218, 3
          %s221 = smul.addr %s220, 8
          %s222 = scalar_lea.vmem %s1, %s221
          %s223 = sadd.s32 %s21, %s22
          %s224 = smul.u32 2, %s223
        $region32: #{improved_spatial_loss.1} parent=23 // pred_fallthru
          _
        // Predicated region
        $region33: #{improved_spatial_loss.1} parent=23 // pred_check
          %p225 = pneg %p104
        $region34: #{improved_spatial_loss.1} parent=23 // pred_check_branch
          %227 = sbr.rel (%p225) target = $region36
        $region35: #{improved_spatial_loss.1} parent=23 // pred_region
          %s228 = sand.u32 %s94, 1
          %s229 = scalar_lea.sflag [#allocation4], %s228
          %s230 = sand.u32 %s94, 1
          %s231 = smul.addr %s230, 16
          %s232 = scalar_lea.vmem [#allocation3], %s231
          %s233 = sadd.s32 %s21, %s22
          %s234 = smul.u32 2, %s233
          %s236 = ssub.s32 256, 256
          %237 = vsyncadd %s229, %s236
          %s238 = smul.addr %s234, 128
          %s239 = scalar_lea.hbm %s2, %s238
          %s240 = sshll.u32 %s232, 4
          %s241 = int_to_ptr.vmem [resolvable:$true] %s240
          %246 = dma.hbm_to_vmem [thread:$0]  %s239, 256, %s241, %s229, 128, 128, 8
        $region36: #{improved_spatial_loss.1} parent=23 // pred_fallthru
          _
      $region24: #{improved_spatial_loss.1} parent=5 // pred_fallthru
        _
      %p247 = scmp.le.s32.totalorder 1, %s14
      %p248 = scmp.lt.s32.totalorder %s14, 3
      %p249 = pnand %p247, %p248
      %p250 = pneg %p249
      // Predicated region
      $region37: #{improved_spatial_loss.1} parent=5 // pred_check
        _
      $region38: #{improved_spatial_loss.1} parent=5 // pred_check_branch
        %252 = sbr.rel (%p249) target = $region40
      $region39: #{improved_spatial_loss.1} parent=5 // pred_region
        %s253 = ssub.s32 %s14, 1
        %s254 = sand.u32 %s97, 1
        %s255 = scalar_lea.sflag [#allocation4], %s254
        %s256 = sand.u32 %s97, 1
        %s257 = smul.addr %s256, 16
        %s258 = scalar_lea.vmem [#allocation3], %s257
        // Predicated region
        $region41: #{improved_spatial_loss.1} parent=39 // pred_check
          %p259 = pneg %p110
        $region42: #{improved_spatial_loss.1} parent=39 // pred_check_branch
          %261 = sbr.rel (%p259) target = $region44
        $region43: #{improved_spatial_loss.1} parent=39 // pred_region
          %262 = dma.done %s255, 256
        $region44: #{improved_spatial_loss.1} parent=39 // pred_fallthru
          _
        %s263 = sadd.s32 %s23, %s24
        %s264 = smul.u32 2, %s263
        %p265 = scmp.lt.s32.totalorder %s264, 3
        %s266 = scalar_select %p265, %s264, 3
        %s267 = smul.addr %s266, 8
        %s268 = scalar_lea.vmem %s0, %s267
        %p269 = pneg %p54
        %p270 = pneg %p51
        %s271 = sadd.s32 %s23, %s24
        %s272 = smul.u32 2, %s271
        %p273 = scmp.lt.s32.totalorder %s272, 3
        %s274 = scalar_select %p273, %s272, 3
        %s275 = smul.addr %s274, 8
        %s276 = scalar_lea.vmem %s1, %s275
        %p277 = pneg %p82
        %p278 = pneg %p79
        %s279 = sand.u32 %s97, 1
        %s280 = scalar_lea.sflag [#allocation4], %s279
        %s281 = sand.u32 %s97, 1
        %s282 = smul.addr %s281, 16
        %s283 = scalar_lea.vmem [#allocation3], %s282
        %p284 = pneg %p110
        %p285 = pneg %p107
        %p286 = pneg %p131
        %p287 = pneg %p128
        %p288 = pneg %p152
        %p289 = pneg %p149
        %p290 = pneg %p178
        %p291 = pneg %p175
        %p292 = scmp.lt.s32.totalorder %s23, 1
        %s293 = scalar_select %p292, %s23, 1
        %s294 = smul.addr %s293, 8
        %s295 = scalar_lea.vmem %s5, %s294
        %s296 = sadd.s32 %s23, %s24
        %s297 = smul.u32 2, %s296
        %p298 = scmp.lt.s32.totalorder %s297, 3
        %s299 = scalar_select %p298, %s297, 3
        %s300 = smul.addr %s299, 8
        %s301 = scalar_lea.vmem %s0, %s300
        %s302 = sadd.s32 %s23, %s24
        %s303 = smul.u32 2, %s302
        %s304 = sadd.s32 %s23, %s24
        %s305 = smul.u32 2, %s304
        %p306 = scmp.lt.s32.totalorder %s305, 3
        %s307 = scalar_select %p306, %s305, 3
        %s308 = smul.addr %s307, 8
        %s309 = scalar_lea.vmem %s1, %s308
        %s310 = sadd.s32 %s23, %s24
        %s311 = smul.u32 2, %s310
        %s312 = sadd.s32 %s23, %s24
        %s313 = smul.u32 2, %s312
        %p314 = scmp.lt.s32.totalorder %s23, 1
        %s315 = scalar_select %p314, %s23, 1
        %s316 = smul.addr %s315, 8
        %s317 = scalar_lea.vmem %s5, %s316
        %p318 = scmp.eq.s32.totalorder %s24, 0
        // Predicated region
        $region45: #{improved_spatial_loss.1} parent=39 // pred_check
          %p319 = pneg %p318
        $region46: #{improved_spatial_loss.1} parent=39 // pred_check_branch
          %321 = sbr.rel (%p319) target = $region48
        $region47: #{improved_spatial_loss.1} parent=39 // pred_region
          %v322 = vld [vmem:[%s3] sm:$0xff]
          %v323 = vld [vmem:[%s3 + $0x8] sm:$0xff]
          %v324 = vld [vmem:[%s3 + $0x10] sm:$0xff]
          %v325 = vld [vmem:[%s3 + $0x18] sm:$0xff]
          %v326 = vld [vmem:[%s4] sm:$0xff]
          %v327 = vld [vmem:[%s4 + $0x8] sm:$0xff]
          %v328 = vld [vmem:[%s4 + $0x10] sm:$0xff]
          %v329 = vld [vmem:[%s4 + $0x18] sm:$0xff]
          %v330 = vand.u32 2147483647, %v326
          %vm331 = vcmp.le.f32.partialorder %v330, 0.7853982
          %vm332 = vcmp.lt.s32.totalorder %v326, 0
          %v333 = vand.u32 %v326, 2139095040
          %v334 = vshrl.u32 %v333, 23
          %v335 = vsub.s32 %v334, 127
          %v336 = vand.u32 2147483647, %v326
          %v337 = vand.u32 %v336, 8388607
          %v338 = vor.u32 %v337, 8388608
          %v339 = vsub.s32 0, %v338
          %v340 = vadd.s32 %v335, 1
          %vm341 = vcmp.gt.s32.totalorder %v340, 0
          %v342 = vsel %vm341, %v340, 0
          %v343 = vshrl.u32 %v342, 5
          %v344 = vand.u32 %v342, 31
          %v345 = vsub.s32 32, %v344
          %v346 = vshrl.u32 683565275, %v345
          %v347 = vshll.u32 683565275, %v344
          %v348 = vshrl.u32 2475754826, %v345
          %v349 = vor.u32 %v347, %v348
          %v350 = vshll.u32 2475754826, %v344
          %v351 = vshrl.u32 2131351028, %v345
          %v352 = vor.u32 %v350, %v351
          %v353 = vshll.u32 2131351028, %v344
          %v354 = vshrl.u32 2102212464, %v345
          %v355 = vor.u32 %v353, %v354
          %v356 = vshll.u32 2102212464, %v344
          %v357 = vshrl.u32 920167782, %v345
          %v358 = vor.u32 %v356, %v357
          %v359 = vshll.u32 920167782, %v344
          %v360 = vshrl.u32 1326507024, %v345
          %v361 = vor.u32 %v359, %v360
          %vm362 = vcmp.lt.s32.totalorder %v343, 1
          %vm363 = vcmp.lt.s32.totalorder %v343, 2
          %vm364 = vcmp.lt.s32.totalorder %v343, 3
          %vm365 = vcmp.lt.s32.totalorder %v343, 4
          %v366 = vsel %vm362, %v346, %v349
          %v367 = vsel %vm365, %v355, 2102212464
          %v368 = vsel %vm364, %v352, %v367
          %v369 = vsel %vm363, %v366, %v368
          %v370 = vsel %vm362, %v349, %v352
          %v371 = vsel %vm365, %v358, 920167782
          %v372 = vsel %vm364, %v355, %v371
          %v373 = vsel %vm363, %v370, %v372
          %v374 = vsel %vm362, %v352, %v355
          %v375 = vsel %vm365, %v361, 1326507024
          %v376 = vsel %vm364, %v358, %v375
          %v377 = vsel %vm363, %v374, %v376
          %v378 = vshll.u32 %v338, 8
          %v379 = vmul.u32.u64.compose %v378, %v377
          %v380 = vextract.low.u32 %v379
          %v381 = vextract.high.u32 %v379
          %v382 = vmul.u32.u64.compose %v378, %v373
          %v383 = vextract.low.u32 %v382
          %v384 = vextract.high.u32 %v382
          %v385 = vmul.u32 %v378, %v369
          %v386 = vadd.s32 %v381, %v383
          %vm387 = vc.u32 %v381, %v383
          %v388 = vadd.s32 %v384, 1
          %v389 = vsel %vm387, %v388, %v384
          %v390 = vadd.s32 %v385, %v389
          %v391 = vadd.s32 %v390, 536870912
          %v392 = vshrl.u32 %v391, 30
          %v393 = vshll.u32 %v392, 30
          %v394 = vsub.s32 %v390, %v393
          %vm395 = vcmp.lt.s32.totalorder %v394, 0
          %v396 = vsub.s32 0, %v394
          %v397 = vsel %vm395, %v396, %v394
          %v398 = vclz %v397
          %v399 = vsub.s32 %v398, 2
          %vm400 = vcmp.gt.s32.totalorder 0, %v399
          %v401 = vsel %vm400, 0, %v399
          %v402 = vsub.s32 32, %v401
          %v403 = vshll.u32 %v394, %v401
          %v404 = vshrl.u32 %v386, %v402
          %v405 = vor.u32 %v403, %v404
          %v406 = vsub.s32 4294967266, %v401
          %v407 = vadd.s32 %v406, 127
          %v408 = vshll.u32 %v407, 23
          %v409 = vor.u32 4788187, %v408
          %v410 = vand.u32 2147483647, %v409
          %v412 = vcvt.s32.f32 %v405
          %v413 = vmul.f32 %v412, %v410
          %v414 = vxor.u32 %v413, 2147483648
          %v415 = vsel %vm332, %v414, %v413
          %v416 = vsub.s32 4, %v392
          %v417 = vsel %vm332, %v416, %v392
          %v418 = vsel %vm331, %v326, %v415
          %v419 = vsel %vm331, 0, %v417
          %v420 = vcosq.f32.pop %v418
          %v421 = vsinq.f32.pop %v418
          %vm422 = vweird.f32 %v326
          %v423 = vadd.s32 %v419, 3
          %v424 = vand.u32 %v423, 3
          %vm425 = vcmp.lt.s32.totalorder %v424, 2
          %vm426 = vcmp.eq.s32.totalorder %v424, 0
          %v427 = vxor.u32 %v421, 2147483648
          %v428 = vsel %vm426, %v420, %v427
          %vm429 = vcmp.eq.s32.totalorder %v424, 2
          %v430 = vxor.u32 %v420, 2147483648
          %v431 = vsel %vm429, %v430, %v421
          %v432 = vsel %vm425, %v428, %v431
          %v433 = vsel %vm422, nan, %v432
          %v434 = vand.u32 2147483647, %v327
          %vm435 = vcmp.le.f32.partialorder %v434, 0.7853982
          %vm436 = vcmp.lt.s32.totalorder %v327, 0
          %v437 = vand.u32 %v327, 2139095040
          %v438 = vshrl.u32 %v437, 23
          %v439 = vsub.s32 %v438, 127
          %v440 = vand.u32 2147483647, %v327
          %v441 = vand.u32 %v440, 8388607
          %v442 = vor.u32 %v441, 8388608
          %v443 = vsub.s32 0, %v442
          %v444 = vadd.s32 %v439, 1
          %vm445 = vcmp.gt.s32.totalorder %v444, 0
          %v446 = vsel %vm445, %v444, 0
          %v447 = vshrl.u32 %v446, 5
          %v448 = vand.u32 %v446, 31
          %v449 = vsub.s32 32, %v448
          %v450 = vshrl.u32 683565275, %v449
          %v451 = vshll.u32 683565275, %v448
          %v452 = vshrl.u32 2475754826, %v449
          %v453 = vor.u32 %v451, %v452
          %v454 = vshll.u32 2475754826, %v448
          %v455 = vshrl.u32 2131351028, %v449
          %v456 = vor.u32 %v454, %v455
          %v457 = vshll.u32 2131351028, %v448
          %v458 = vshrl.u32 2102212464, %v449
          %v459 = vor.u32 %v457, %v458
          %v460 = vshll.u32 2102212464, %v448
          %v461 = vshrl.u32 920167782, %v449
          %v462 = vor.u32 %v460, %v461
          %v463 = vshll.u32 920167782, %v448
          %v464 = vshrl.u32 1326507024, %v449
          %v465 = vor.u32 %v463, %v464
          %vm466 = vcmp.lt.s32.totalorder %v447, 1
          %vm467 = vcmp.lt.s32.totalorder %v447, 2
          %vm468 = vcmp.lt.s32.totalorder %v447, 3
          %vm469 = vcmp.lt.s32.totalorder %v447, 4
          %v470 = vsel %vm466, %v450, %v453
          %v471 = vsel %vm469, %v459, 2102212464
          %v472 = vsel %vm468, %v456, %v471
          %v473 = vsel %vm467, %v470, %v472
          %v474 = vsel %vm466, %v453, %v456
          %v475 = vsel %vm469, %v462, 920167782
          %v476 = vsel %vm468, %v459, %v475
          %v477 = vsel %vm467, %v474, %v476
          %v478 = vsel %vm466, %v456, %v459
          %v479 = vsel %vm469, %v465, 1326507024
          %v480 = vsel %vm468, %v462, %v479
          %v481 = vsel %vm467, %v478, %v480
          %v482 = vshll.u32 %v442, 8
          %v483 = vmul.u32.u64.compose %v482, %v481
          %v484 = vextract.low.u32 %v483
          %v485 = vextract.high.u32 %v483
          %v486 = vmul.u32.u64.compose %v482, %v477
          %v487 = vextract.low.u32 %v486
          %v488 = vextract.high.u32 %v486
          %v489 = vmul.u32 %v482, %v473
          %v490 = vadd.s32 %v485, %v487
          %vm491 = vc.u32 %v485, %v487
          %v492 = vadd.s32 %v488, 1
          %v493 = vsel %vm491, %v492, %v488
          %v494 = vadd.s32 %v489, %v493
          %v495 = vadd.s32 %v494, 536870912
          %v496 = vshrl.u32 %v495, 30
          %v497 = vshll.u32 %v496, 30
          %v498 = vsub.s32 %v494, %v497
          %vm499 = vcmp.lt.s32.totalorder %v498, 0
          %v500 = vsub.s32 0, %v498
          %v501 = vsel %vm499, %v500, %v498
          %v502 = vclz %v501
          %v503 = vsub.s32 %v502, 2
          %vm504 = vcmp.gt.s32.totalorder 0, %v503
          %v505 = vsel %vm504, 0, %v503
          %v506 = vsub.s32 32, %v505
          %v507 = vshll.u32 %v498, %v505
          %v508 = vshrl.u32 %v490, %v506
          %v509 = vor.u32 %v507, %v508
          %v510 = vsub.s32 4294967266, %v505
          %v511 = vadd.s32 %v510, 127
          %v512 = vshll.u32 %v511, 23
          %v513 = vor.u32 4788187, %v512
          %v514 = vand.u32 2147483647, %v513
          %v516 = vcvt.s32.f32 %v509
          %v517 = vmul.f32 %v516, %v514
          %v518 = vxor.u32 %v517, 2147483648
          %v519 = vsel %vm436, %v518, %v517
          %v520 = vsub.s32 4, %v496
          %v521 = vsel %vm436, %v520, %v496
          %v522 = vsel %vm435, %v327, %v519
          %v523 = vsel %vm435, 0, %v521
          %v524 = vcosq.f32.pop %v522
          %v525 = vsinq.f32.pop %v522
          %vm526 = vweird.f32 %v327
          %v527 = vadd.s32 %v523, 3
          %v528 = vand.u32 %v527, 3
          %vm529 = vcmp.lt.s32.totalorder %v528, 2
          %vm530 = vcmp.eq.s32.totalorder %v528, 0
          %v531 = vxor.u32 %v525, 2147483648
          %v532 = vsel %vm530, %v524, %v531
          %vm533 = vcmp.eq.s32.totalorder %v528, 2
          %v534 = vxor.u32 %v524, 2147483648
          %v535 = vsel %vm533, %v534, %v525
          %v536 = vsel %vm529, %v532, %v535
          %v537 = vsel %vm526, nan, %v536
          %v538 = vand.u32 2147483647, %v328
          %vm539 = vcmp.le.f32.partialorder %v538, 0.7853982
          %vm540 = vcmp.lt.s32.totalorder %v328, 0
          %v541 = vand.u32 %v328, 2139095040
          %v542 = vshrl.u32 %v541, 23
          %v543 = vsub.s32 %v542, 127
          %v544 = vand.u32 2147483647, %v328
          %v545 = vand.u32 %v544, 8388607
          %v546 = vor.u32 %v545, 8388608
          %v547 = vsub.s32 0, %v546
          %v548 = vadd.s32 %v543, 1
          %vm549 = vcmp.gt.s32.totalorder %v548, 0
          %v550 = vsel %vm549, %v548, 0
          %v551 = vshrl.u32 %v550, 5
          %v552 = vand.u32 %v550, 31
          %v553 = vsub.s32 32, %v552
          %v554 = vshrl.u32 683565275, %v553
          %v555 = vshll.u32 683565275, %v552
          %v556 = vshrl.u32 2475754826, %v553
          %v557 = vor.u32 %v555, %v556
          %v558 = vshll.u32 2475754826, %v552
          %v559 = vshrl.u32 2131351028, %v553
          %v560 = vor.u32 %v558, %v559
          %v561 = vshll.u32 2131351028, %v552
          %v562 = vshrl.u32 2102212464, %v553
          %v563 = vor.u32 %v561, %v562
          %v564 = vshll.u32 2102212464, %v552
          %v565 = vshrl.u32 920167782, %v553
          %v566 = vor.u32 %v564, %v565
          %v567 = vshll.u32 920167782, %v552
          %v568 = vshrl.u32 1326507024, %v553
          %v569 = vor.u32 %v567, %v568
          %vm570 = vcmp.lt.s32.totalorder %v551, 1
          %vm571 = vcmp.lt.s32.totalorder %v551, 2
          %vm572 = vcmp.lt.s32.totalorder %v551, 3
          %vm573 = vcmp.lt.s32.totalorder %v551, 4
          %v574 = vsel %vm570, %v554, %v557
          %v575 = vsel %vm573, %v563, 2102212464
          %v576 = vsel %vm572, %v560, %v575
          %v577 = vsel %vm571, %v574, %v576
          %v578 = vsel %vm570, %v557, %v560
          %v579 = vsel %vm573, %v566, 920167782
          %v580 = vsel %vm572, %v563, %v579
          %v581 = vsel %vm571, %v578, %v580
          %v582 = vsel %vm570, %v560, %v563
          %v583 = vsel %vm573, %v569, 1326507024
          %v584 = vsel %vm572, %v566, %v583
          %v585 = vsel %vm571, %v582, %v584
          %v586 = vshll.u32 %v546, 8
          %v587 = vmul.u32.u64.compose %v586, %v585
          %v588 = vextract.low.u32 %v587
          %v589 = vextract.high.u32 %v587
          %v590 = vmul.u32.u64.compose %v586, %v581
          %v591 = vextract.low.u32 %v590
          %v592 = vextract.high.u32 %v590
          %v593 = vmul.u32 %v586, %v577
          %v594 = vadd.s32 %v589, %v591
          %vm595 = vc.u32 %v589, %v591
          %v596 = vadd.s32 %v592, 1
          %v597 = vsel %vm595, %v596, %v592
          %v598 = vadd.s32 %v593, %v597
          %v599 = vadd.s32 %v598, 536870912
          %v600 = vshrl.u32 %v599, 30
          %v601 = vshll.u32 %v600, 30
          %v602 = vsub.s32 %v598, %v601
          %vm603 = vcmp.lt.s32.totalorder %v602, 0
          %v604 = vsub.s32 0, %v602
          %v605 = vsel %vm603, %v604, %v602
          %v606 = vclz %v605
          %v607 = vsub.s32 %v606, 2
          %vm608 = vcmp.gt.s32.totalorder 0, %v607
          %v609 = vsel %vm608, 0, %v607
          %v610 = vsub.s32 32, %v609
          %v611 = vshll.u32 %v602, %v609
          %v612 = vshrl.u32 %v594, %v610
          %v613 = vor.u32 %v611, %v612
          %v614 = vsub.s32 4294967266, %v609
          %v615 = vadd.s32 %v614, 127
          %v616 = vshll.u32 %v615, 23
          %v617 = vor.u32 4788187, %v616
          %v618 = vand.u32 2147483647, %v617
          %v620 = vcvt.s32.f32 %v613
          %v621 = vmul.f32 %v620, %v618
          %v622 = vxor.u32 %v621, 2147483648
          %v623 = vsel %vm540, %v622, %v621
          %v624 = vsub.s32 4, %v600
          %v625 = vsel %vm540, %v624, %v600
          %v626 = vsel %vm539, %v328, %v623
          %v627 = vsel %vm539, 0, %v625
          %v628 = vcosq.f32.pop %v626
          %v629 = vsinq.f32.pop %v626
          %vm630 = vweird.f32 %v328
          %v631 = vadd.s32 %v627, 3
          %v632 = vand.u32 %v631, 3
          %vm633 = vcmp.lt.s32.totalorder %v632, 2
          %vm634 = vcmp.eq.s32.totalorder %v632, 0
          %v635 = vxor.u32 %v629, 2147483648
          %v636 = vsel %vm634, %v628, %v635
          %vm637 = vcmp.eq.s32.totalorder %v632, 2
          %v638 = vxor.u32 %v628, 2147483648
          %v639 = vsel %vm637, %v638, %v629
          %v640 = vsel %vm633, %v636, %v639
          %v641 = vsel %vm630, nan, %v640
          %v642 = vand.u32 2147483647, %v329
          %vm643 = vcmp.le.f32.partialorder %v642, 0.7853982
          %vm644 = vcmp.lt.s32.totalorder %v329, 0
          %v645 = vand.u32 %v329, 2139095040
          %v646 = vshrl.u32 %v645, 23
          %v647 = vsub.s32 %v646, 127
          %v648 = vand.u32 2147483647, %v329
          %v649 = vand.u32 %v648, 8388607
          %v650 = vor.u32 %v649, 8388608
          %v651 = vsub.s32 0, %v650
          %v652 = vadd.s32 %v647, 1
          %vm653 = vcmp.gt.s32.totalorder %v652, 0
          %v654 = vsel %vm653, %v652, 0
          %v655 = vshrl.u32 %v654, 5
          %v656 = vand.u32 %v654, 31
          %v657 = vsub.s32 32, %v656
          %v658 = vshrl.u32 683565275, %v657
          %v659 = vshll.u32 683565275, %v656
          %v660 = vshrl.u32 2475754826, %v657
          %v661 = vor.u32 %v659, %v660
          %v662 = vshll.u32 2475754826, %v656
          %v663 = vshrl.u32 2131351028, %v657
          %v664 = vor.u32 %v662, %v663
          %v665 = vshll.u32 2131351028, %v656
          %v666 = vshrl.u32 2102212464, %v657
          %v667 = vor.u32 %v665, %v666
          %v668 = vshll.u32 2102212464, %v656
          %v669 = vshrl.u32 920167782, %v657
          %v670 = vor.u32 %v668, %v669
          %v671 = vshll.u32 920167782, %v656
          %v672 = vshrl.u32 1326507024, %v657
          %v673 = vor.u32 %v671, %v672
          %vm674 = vcmp.lt.s32.totalorder %v655, 1
          %vm675 = vcmp.lt.s32.totalorder %v655, 2
          %vm676 = vcmp.lt.s32.totalorder %v655, 3
          %vm677 = vcmp.lt.s32.totalorder %v655, 4
          %v678 = vsel %vm674, %v658, %v661
          %v679 = vsel %vm677, %v667, 2102212464
          %v680 = vsel %vm676, %v664, %v679
          %v681 = vsel %vm675, %v678, %v680
          %v682 = vsel %vm674, %v661, %v664
          %v683 = vsel %vm677, %v670, 920167782
          %v684 = vsel %vm676, %v667, %v683
          %v685 = vsel %vm675, %v682, %v684
          %v686 = vsel %vm674, %v664, %v667
          %v687 = vsel %vm677, %v673, 1326507024
          %v688 = vsel %vm676, %v670, %v687
          %v689 = vsel %vm675, %v686, %v688
          %v690 = vshll.u32 %v650, 8
          %v691 = vmul.u32.u64.compose %v690, %v689
          %v692 = vextract.low.u32 %v691
          %v693 = vextract.high.u32 %v691
          %v694 = vmul.u32.u64.compose %v690, %v685
          %v695 = vextract.low.u32 %v694
          %v696 = vextract.high.u32 %v694
          %v697 = vmul.u32 %v690, %v681
          %v698 = vadd.s32 %v693, %v695
          %vm699 = vc.u32 %v693, %v695
          %v700 = vadd.s32 %v696, 1
          %v701 = vsel %vm699, %v700, %v696
          %v702 = vadd.s32 %v697, %v701
          %v703 = vadd.s32 %v702, 536870912
          %v704 = vshrl.u32 %v703, 30
          %v705 = vshll.u32 %v704, 30
          %v706 = vsub.s32 %v702, %v705
          %vm707 = vcmp.lt.s32.totalorder %v706, 0
          %v708 = vsub.s32 0, %v706
          %v709 = vsel %vm707, %v708, %v706
          %v710 = vclz %v709
          %v711 = vsub.s32 %v710, 2
          %vm712 = vcmp.gt.s32.totalorder 0, %v711
          %v713 = vsel %vm712, 0, %v711
          %v714 = vsub.s32 32, %v713
          %v715 = vshll.u32 %v706, %v713
          %v716 = vshrl.u32 %v698, %v714
          %v717 = vor.u32 %v715, %v716
          %v718 = vsub.s32 4294967266, %v713
          %v719 = vadd.s32 %v718, 127
          %v720 = vshll.u32 %v719, 23
          %v721 = vor.u32 4788187, %v720
          %v722 = vand.u32 2147483647, %v721
          %v724 = vcvt.s32.f32 %v717
          %v725 = vmul.f32 %v724, %v722
          %v726 = vxor.u32 %v725, 2147483648
          %v727 = vsel %vm644, %v726, %v725
          %v728 = vsub.s32 4, %v704
          %v729 = vsel %vm644, %v728, %v704
          %v730 = vsel %vm643, %v329, %v727
          %v731 = vsel %vm643, 0, %v729
          %v732 = vcosq.f32.pop %v730
          %v733 = vsinq.f32.pop %v730
          %vm734 = vweird.f32 %v329
          %v735 = vadd.s32 %v731, 3
          %v736 = vand.u32 %v735, 3
          %vm737 = vcmp.lt.s32.totalorder %v736, 2
          %vm738 = vcmp.eq.s32.totalorder %v736, 0
          %v739 = vxor.u32 %v733, 2147483648
          %v740 = vsel %vm738, %v732, %v739
          %vm741 = vcmp.eq.s32.totalorder %v736, 2
          %v742 = vxor.u32 %v732, 2147483648
          %v743 = vsel %vm741, %v742, %v733
          %v744 = vsel %vm737, %v740, %v743
          %v745 = vsel %vm734, nan, %v744
          %v746 = vand.u32 2147483647, %v326
          %vm747 = vcmp.le.f32.partialorder %v746, 0.7853982
          %vm748 = vcmp.lt.s32.totalorder %v326, 0
          %v749 = vand.u32 %v326, 2139095040
          %v750 = vshrl.u32 %v749, 23
          %v751 = vsub.s32 %v750, 127
          %v752 = vand.u32 2147483647, %v326
          %v753 = vand.u32 %v752, 8388607
          %v754 = vor.u32 %v753, 8388608
          %v755 = vsub.s32 0, %v754
          %v756 = vadd.s32 %v751, 1
          %vm757 = vcmp.gt.s32.totalorder %v756, 0
          %v758 = vsel %vm757, %v756, 0
          %v759 = vshrl.u32 %v758, 5
          %v760 = vand.u32 %v758, 31
          %v761 = vsub.s32 32, %v760
          %v762 = vshrl.u32 683565275, %v761
          %v763 = vshll.u32 683565275, %v760
          %v764 = vshrl.u32 2475754826, %v761
          %v765 = vor.u32 %v763, %v764
          %v766 = vshll.u32 2475754826, %v760
          %v767 = vshrl.u32 2131351028, %v761
          %v768 = vor.u32 %v766, %v767
          %v769 = vshll.u32 2131351028, %v760
          %v770 = vshrl.u32 2102212464, %v761
          %v771 = vor.u32 %v769, %v770
          %v772 = vshll.u32 2102212464, %v760
          %v773 = vshrl.u32 920167782, %v761
          %v774 = vor.u32 %v772, %v773
          %v775 = vshll.u32 920167782, %v760
          %v776 = vshrl.u32 1326507024, %v761
          %v777 = vor.u32 %v775, %v776
          %vm778 = vcmp.lt.s32.totalorder %v759, 1
          %vm779 = vcmp.lt.s32.totalorder %v759, 2
          %vm780 = vcmp.lt.s32.totalorder %v759, 3
          %vm781 = vcmp.lt.s32.totalorder %v759, 4
          %v782 = vsel %vm778, %v762, %v765
          %v783 = vsel %vm781, %v771, 2102212464
          %v784 = vsel %vm780, %v768, %v783
          %v785 = vsel %vm779, %v782, %v784
          %v786 = vsel %vm778, %v765, %v768
          %v787 = vsel %vm781, %v774, 920167782
          %v788 = vsel %vm780, %v771, %v787
          %v789 = vsel %vm779, %v786, %v788
          %v790 = vsel %vm778, %v768, %v771
          %v791 = vsel %vm781, %v777, 1326507024
          %v792 = vsel %vm780, %v774, %v791
          %v793 = vsel %vm779, %v790, %v792
          %v794 = vshll.u32 %v754, 8
          %v795 = vmul.u32.u64.compose %v794, %v793
          %v796 = vextract.low.u32 %v795
          %v797 = vextract.high.u32 %v795
          %v798 = vmul.u32.u64.compose %v794, %v789
          %v799 = vextract.low.u32 %v798
          %v800 = vextract.high.u32 %v798
          %v801 = vmul.u32 %v794, %v785
          %v802 = vadd.s32 %v797, %v799
          %vm803 = vc.u32 %v797, %v799
          %v804 = vadd.s32 %v800, 1
          %v805 = vsel %vm803, %v804, %v800
          %v806 = vadd.s32 %v801, %v805
          %v807 = vadd.s32 %v806, 536870912
          %v808 = vshrl.u32 %v807, 30
          %v809 = vshll.u32 %v808, 30
          %v810 = vsub.s32 %v806, %v809
          %vm811 = vcmp.lt.s32.totalorder %v810, 0
          %v812 = vsub.s32 0, %v810
          %v813 = vsel %vm811, %v812, %v810
          %v814 = vclz %v813
          %v815 = vsub.s32 %v814, 2
          %vm816 = vcmp.gt.s32.totalorder 0, %v815
          %v817 = vsel %vm816, 0, %v815
          %v818 = vsub.s32 32, %v817
          %v819 = vshll.u32 %v810, %v817
          %v820 = vshrl.u32 %v802, %v818
          %v821 = vor.u32 %v819, %v820
          %v822 = vsub.s32 4294967266, %v817
          %v823 = vadd.s32 %v822, 127
          %v824 = vshll.u32 %v823, 23
          %v825 = vor.u32 4788187, %v824
          %v826 = vand.u32 2147483647, %v825
          %v828 = vcvt.s32.f32 %v821
          %v829 = vmul.f32 %v828, %v826
          %v830 = vxor.u32 %v829, 2147483648
          %v831 = vsel %vm748, %v830, %v829
          %v832 = vsub.s32 4, %v808
          %v833 = vsel %vm748, %v832, %v808
          %v834 = vsel %vm747, %v326, %v831
          %v835 = vsel %vm747, 0, %v833
          %v836 = vcosq.f32.pop %v834
          %v837 = vsinq.f32.pop %v834
          %vm838 = vweird.f32 %v326
          %v839 = vand.u32 %v835, 3
          %vm840 = vcmp.lt.s32.totalorder %v839, 2
          %vm841 = vcmp.eq.s32.totalorder %v839, 0
          %v842 = vxor.u32 %v837, 2147483648
          %v843 = vsel %vm841, %v836, %v842
          %vm844 = vcmp.eq.s32.totalorder %v839, 2
          %v845 = vxor.u32 %v836, 2147483648
          %v846 = vsel %vm844, %v845, %v837
          %v847 = vsel %vm840, %v843, %v846
          %v848 = vsel %vm838, nan, %v847
          %v849 = vand.u32 2147483647, %v327
          %vm850 = vcmp.le.f32.partialorder %v849, 0.7853982
          %vm851 = vcmp.lt.s32.totalorder %v327, 0
          %v852 = vand.u32 %v327, 2139095040
          %v853 = vshrl.u32 %v852, 23
          %v854 = vsub.s32 %v853, 127
          %v855 = vand.u32 2147483647, %v327
          %v856 = vand.u32 %v855, 8388607
          %v857 = vor.u32 %v856, 8388608
          %v858 = vsub.s32 0, %v857
          %v859 = vadd.s32 %v854, 1
          %vm860 = vcmp.gt.s32.totalorder %v859, 0
          %v861 = vsel %vm860, %v859, 0
          %v862 = vshrl.u32 %v861, 5
          %v863 = vand.u32 %v861, 31
          %v864 = vsub.s32 32, %v863
          %v865 = vshrl.u32 683565275, %v864
          %v866 = vshll.u32 683565275, %v863
          %v867 = vshrl.u32 2475754826, %v864
          %v868 = vor.u32 %v866, %v867
          %v869 = vshll.u32 2475754826, %v863
          %v870 = vshrl.u32 2131351028, %v864
          %v871 = vor.u32 %v869, %v870
          %v872 = vshll.u32 2131351028, %v863
          %v873 = vshrl.u32 2102212464, %v864
          %v874 = vor.u32 %v872, %v873
          %v875 = vshll.u32 2102212464, %v863
          %v876 = vshrl.u32 920167782, %v864
          %v877 = vor.u32 %v875, %v876
          %v878 = vshll.u32 920167782, %v863
          %v879 = vshrl.u32 1326507024, %v864
          %v880 = vor.u32 %v878, %v879
          %vm881 = vcmp.lt.s32.totalorder %v862, 1
          %vm882 = vcmp.lt.s32.totalorder %v862, 2
          %vm883 = vcmp.lt.s32.totalorder %v862, 3
          %vm884 = vcmp.lt.s32.totalorder %v862, 4
          %v885 = vsel %vm881, %v865, %v868
          %v886 = vsel %vm884, %v874, 2102212464
          %v887 = vsel %vm883, %v871, %v886
          %v888 = vsel %vm882, %v885, %v887
          %v889 = vsel %vm881, %v868, %v871
          %v890 = vsel %vm884, %v877, 920167782
          %v891 = vsel %vm883, %v874, %v890
          %v892 = vsel %vm882, %v889, %v891
          %v893 = vsel %vm881, %v871, %v874
          %v894 = vsel %vm884, %v880, 1326507024
          %v895 = vsel %vm883, %v877, %v894
          %v896 = vsel %vm882, %v893, %v895
          %v897 = vshll.u32 %v857, 8
          %v898 = vmul.u32.u64.compose %v897, %v896
          %v899 = vextract.low.u32 %v898
          %v900 = vextract.high.u32 %v898
          %v901 = vmul.u32.u64.compose %v897, %v892
          %v902 = vextract.low.u32 %v901
          %v903 = vextract.high.u32 %v901
          %v904 = vmul.u32 %v897, %v888
          %v905 = vadd.s32 %v900, %v902
          %vm906 = vc.u32 %v900, %v902
          %v907 = vadd.s32 %v903, 1
          %v908 = vsel %vm906, %v907, %v903
          %v909 = vadd.s32 %v904, %v908
          %v910 = vadd.s32 %v909, 536870912
          %v911 = vshrl.u32 %v910, 30
          %v912 = vshll.u32 %v911, 30
          %v913 = vsub.s32 %v909, %v912
          %vm914 = vcmp.lt.s32.totalorder %v913, 0
          %v915 = vsub.s32 0, %v913
          %v916 = vsel %vm914, %v915, %v913
          %v917 = vclz %v916
          %v918 = vsub.s32 %v917, 2
          %vm919 = vcmp.gt.s32.totalorder 0, %v918
          %v920 = vsel %vm919, 0, %v918
          %v921 = vsub.s32 32, %v920
          %v922 = vshll.u32 %v913, %v920
          %v923 = vshrl.u32 %v905, %v921
          %v924 = vor.u32 %v922, %v923
          %v925 = vsub.s32 4294967266, %v920
          %v926 = vadd.s32 %v925, 127
          %v927 = vshll.u32 %v926, 23
          %v928 = vor.u32 4788187, %v927
          %v929 = vand.u32 2147483647, %v928
          %v931 = vcvt.s32.f32 %v924
          %v932 = vmul.f32 %v931, %v929
          %v933 = vxor.u32 %v932, 2147483648
          %v934 = vsel %vm851, %v933, %v932
          %v935 = vsub.s32 4, %v911
          %v936 = vsel %vm851, %v935, %v911
          %v937 = vsel %vm850, %v327, %v934
          %v938 = vsel %vm850, 0, %v936
          %v939 = vcosq.f32.pop %v937
          %v940 = vsinq.f32.pop %v937
          %vm941 = vweird.f32 %v327
          %v942 = vand.u32 %v938, 3
          %vm943 = vcmp.lt.s32.totalorder %v942, 2
          %vm944 = vcmp.eq.s32.totalorder %v942, 0
          %v945 = vxor.u32 %v940, 2147483648
          %v946 = vsel %vm944, %v939, %v945
          %vm947 = vcmp.eq.s32.totalorder %v942, 2
          %v948 = vxor.u32 %v939, 2147483648
          %v949 = vsel %vm947, %v948, %v940
          %v950 = vsel %vm943, %v946, %v949
          %v951 = vsel %vm941, nan, %v950
          %v952 = vand.u32 2147483647, %v328
          %vm953 = vcmp.le.f32.partialorder %v952, 0.7853982
          %vm954 = vcmp.lt.s32.totalorder %v328, 0
          %v955 = vand.u32 %v328, 2139095040
          %v956 = vshrl.u32 %v955, 23
          %v957 = vsub.s32 %v956, 127
          %v958 = vand.u32 2147483647, %v328
          %v959 = vand.u32 %v958, 8388607
          %v960 = vor.u32 %v959, 8388608
          %v961 = vsub.s32 0, %v960
          %v962 = vadd.s32 %v957, 1
          %vm963 = vcmp.gt.s32.totalorder %v962, 0
          %v964 = vsel %vm963, %v962, 0
          %v965 = vshrl.u32 %v964, 5
          %v966 = vand.u32 %v964, 31
          %v967 = vsub.s32 32, %v966
          %v968 = vshrl.u32 683565275, %v967
          %v969 = vshll.u32 683565275, %v966
          %v970 = vshrl.u32 2475754826, %v967
          %v971 = vor.u32 %v969, %v970
          %v972 = vshll.u32 2475754826, %v966
          %v973 = vshrl.u32 2131351028, %v967
          %v974 = vor.u32 %v972, %v973
          %v975 = vshll.u32 2131351028, %v966
          %v976 = vshrl.u32 2102212464, %v967
          %v977 = vor.u32 %v975, %v976
          %v978 = vshll.u32 2102212464, %v966
          %v979 = vshrl.u32 920167782, %v967
          %v980 = vor.u32 %v978, %v979
          %v981 = vshll.u32 920167782, %v966
          %v982 = vshrl.u32 1326507024, %v967
          %v983 = vor.u32 %v981, %v982
          %vm984 = vcmp.lt.s32.totalorder %v965, 1
          %vm985 = vcmp.lt.s32.totalorder %v965, 2
          %vm986 = vcmp.lt.s32.totalorder %v965, 3
          %vm987 = vcmp.lt.s32.totalorder %v965, 4
          %v988 = vsel %vm984, %v968, %v971
          %v989 = vsel %vm987, %v977, 2102212464
          %v990 = vsel %vm986, %v974, %v989
          %v991 = vsel %vm985, %v988, %v990
          %v992 = vsel %vm984, %v971, %v974
          %v993 = vsel %vm987, %v980, 920167782
          %v994 = vsel %vm986, %v977, %v993
          %v995 = vsel %vm985, %v992, %v994
          %v996 = vsel %vm984, %v974, %v977
          %v997 = vsel %vm987, %v983, 1326507024
          %v998 = vsel %vm986, %v980, %v997
          %v999 = vsel %vm985, %v996, %v998
          %v1000 = vshll.u32 %v960, 8
          %v1001 = vmul.u32.u64.compose %v1000, %v999
          %v1002 = vextract.low.u32 %v1001
          %v1003 = vextract.high.u32 %v1001
          %v1004 = vmul.u32.u64.compose %v1000, %v995
          %v1005 = vextract.low.u32 %v1004
          %v1006 = vextract.high.u32 %v1004
          %v1007 = vmul.u32 %v1000, %v991
          %v1008 = vadd.s32 %v1003, %v1005
          %vm1009 = vc.u32 %v1003, %v1005
          %v1010 = vadd.s32 %v1006, 1
          %v1011 = vsel %vm1009, %v1010, %v1006
          %v1012 = vadd.s32 %v1007, %v1011
          %v1013 = vadd.s32 %v1012, 536870912
          %v1014 = vshrl.u32 %v1013, 30
          %v1015 = vshll.u32 %v1014, 30
          %v1016 = vsub.s32 %v1012, %v1015
          %vm1017 = vcmp.lt.s32.totalorder %v1016, 0
          %v1018 = vsub.s32 0, %v1016
          %v1019 = vsel %vm1017, %v1018, %v1016
          %v1020 = vclz %v1019
          %v1021 = vsub.s32 %v1020, 2
          %vm1022 = vcmp.gt.s32.totalorder 0, %v1021
          %v1023 = vsel %vm1022, 0, %v1021
          %v1024 = vsub.s32 32, %v1023
          %v1025 = vshll.u32 %v1016, %v1023
          %v1026 = vshrl.u32 %v1008, %v1024
          %v1027 = vor.u32 %v1025, %v1026
          %v1028 = vsub.s32 4294967266, %v1023
          %v1029 = vadd.s32 %v1028, 127
          %v1030 = vshll.u32 %v1029, 23
          %v1031 = vor.u32 4788187, %v1030
          %v1032 = vand.u32 2147483647, %v1031
          %v1034 = vcvt.s32.f32 %v1027
          %v1035 = vmul.f32 %v1034, %v1032
          %v1036 = vxor.u32 %v1035, 2147483648
          %v1037 = vsel %vm954, %v1036, %v1035
          %v1038 = vsub.s32 4, %v1014
          %v1039 = vsel %vm954, %v1038, %v1014
          %v1040 = vsel %vm953, %v328, %v1037
          %v1041 = vsel %vm953, 0, %v1039
          %v1042 = vcosq.f32.pop %v1040
          %v1043 = vsinq.f32.pop %v1040
          %vm1044 = vweird.f32 %v328
          %v1045 = vand.u32 %v1041, 3
          %vm1046 = vcmp.lt.s32.totalorder %v1045, 2
          %vm1047 = vcmp.eq.s32.totalorder %v1045, 0
          %v1048 = vxor.u32 %v1043, 2147483648
          %v1049 = vsel %vm1047, %v1042, %v1048
          %vm1050 = vcmp.eq.s32.totalorder %v1045, 2
          %v1051 = vxor.u32 %v1042, 2147483648
          %v1052 = vsel %vm1050, %v1051, %v1043
          %v1053 = vsel %vm1046, %v1049, %v1052
          %v1054 = vsel %vm1044, nan, %v1053
          %v1055 = vand.u32 2147483647, %v329
          %vm1056 = vcmp.le.f32.partialorder %v1055, 0.7853982
          %vm1057 = vcmp.lt.s32.totalorder %v329, 0
          %v1058 = vand.u32 %v329, 2139095040
          %v1059 = vshrl.u32 %v1058, 23
          %v1060 = vsub.s32 %v1059, 127
          %v1061 = vand.u32 2147483647, %v329
          %v1062 = vand.u32 %v1061, 8388607
          %v1063 = vor.u32 %v1062, 8388608
          %v1064 = vsub.s32 0, %v1063
          %v1065 = vadd.s32 %v1060, 1
          %vm1066 = vcmp.gt.s32.totalorder %v1065, 0
          %v1067 = vsel %vm1066, %v1065, 0
          %v1068 = vshrl.u32 %v1067, 5
          %v1069 = vand.u32 %v1067, 31
          %v1070 = vsub.s32 32, %v1069
          %v1071 = vshrl.u32 683565275, %v1070
          %v1072 = vshll.u32 683565275, %v1069
          %v1073 = vshrl.u32 2475754826, %v1070
          %v1074 = vor.u32 %v1072, %v1073
          %v1075 = vshll.u32 2475754826, %v1069
          %v1076 = vshrl.u32 2131351028, %v1070
          %v1077 = vor.u32 %v1075, %v1076
          %v1078 = vshll.u32 2131351028, %v1069
          %v1079 = vshrl.u32 2102212464, %v1070
          %v1080 = vor.u32 %v1078, %v1079
          %v1081 = vshll.u32 2102212464, %v1069
          %v1082 = vshrl.u32 920167782, %v1070
          %v1083 = vor.u32 %v1081, %v1082
          %v1084 = vshll.u32 920167782, %v1069
          %v1085 = vshrl.u32 1326507024, %v1070
          %v1086 = vor.u32 %v1084, %v1085
          %vm1087 = vcmp.lt.s32.totalorder %v1068, 1
          %vm1088 = vcmp.lt.s32.totalorder %v1068, 2
          %vm1089 = vcmp.lt.s32.totalorder %v1068, 3
          %vm1090 = vcmp.lt.s32.totalorder %v1068, 4
          %v1091 = vsel %vm1087, %v1071, %v1074
          %v1092 = vsel %vm1090, %v1080, 2102212464
          %v1093 = vsel %vm1089, %v1077, %v1092
          %v1094 = vsel %vm1088, %v1091, %v1093
          %v1095 = vsel %vm1087, %v1074, %v1077
          %v1096 = vsel %vm1090, %v1083, 920167782
          %v1097 = vsel %vm1089, %v1080, %v1096
          %v1098 = vsel %vm1088, %v1095, %v1097
          %v1099 = vsel %vm1087, %v1077, %v1080
          %v1100 = vsel %vm1090, %v1086, 1326507024
          %v1101 = vsel %vm1089, %v1083, %v1100
          %v1102 = vsel %vm1088, %v1099, %v1101
          %v1103 = vshll.u32 %v1063, 8
          %v1104 = vmul.u32.u64.compose %v1103, %v1102
          %v1105 = vextract.low.u32 %v1104
          %v1106 = vextract.high.u32 %v1104
          %v1107 = vmul.u32.u64.compose %v1103, %v1098
          %v1108 = vextract.low.u32 %v1107
          %v1109 = vextract.high.u32 %v1107
          %v1110 = vmul.u32 %v1103, %v1094
          %v1111 = vadd.s32 %v1106, %v1108
          %vm1112 = vc.u32 %v1106, %v1108
          %v1113 = vadd.s32 %v1109, 1
          %v1114 = vsel %vm1112, %v1113, %v1109
          %v1115 = vadd.s32 %v1110, %v1114
          %v1116 = vadd.s32 %v1115, 536870912
          %v1117 = vshrl.u32 %v1116, 30
          %v1118 = vshll.u32 %v1117, 30
          %v1119 = vsub.s32 %v1115, %v1118
          %vm1120 = vcmp.lt.s32.totalorder %v1119, 0
          %v1121 = vsub.s32 0, %v1119
          %v1122 = vsel %vm1120, %v1121, %v1119
          %v1123 = vclz %v1122
          %v1124 = vsub.s32 %v1123, 2
          %vm1125 = vcmp.gt.s32.totalorder 0, %v1124
          %v1126 = vsel %vm1125, 0, %v1124
          %v1127 = vsub.s32 32, %v1126
          %v1128 = vshll.u32 %v1119, %v1126
          %v1129 = vshrl.u32 %v1111, %v1127
          %v1130 = vor.u32 %v1128, %v1129
          %v1131 = vsub.s32 4294967266, %v1126
          %v1132 = vadd.s32 %v1131, 127
          %v1133 = vshll.u32 %v1132, 23
          %v1134 = vor.u32 4788187, %v1133
          %v1135 = vand.u32 2147483647, %v1134
          %v1137 = vcvt.s32.f32 %v1130
          %v1138 = vmul.f32 %v1137, %v1135
          %v1139 = vxor.u32 %v1138, 2147483648
          %v1140 = vsel %vm1057, %v1139, %v1138
          %v1141 = vsub.s32 4, %v1117
          %v1142 = vsel %vm1057, %v1141, %v1117
          %v1143 = vsel %vm1056, %v329, %v1140
          %v1144 = vsel %vm1056, 0, %v1142
          %v1145 = vcosq.f32.pop %v1143
          %v1146 = vsinq.f32.pop %v1143
          %vm1147 = vweird.f32 %v329
          %v1148 = vand.u32 %v1144, 3
          %vm1149 = vcmp.lt.s32.totalorder %v1148, 2
          %vm1150 = vcmp.eq.s32.totalorder %v1148, 0
          %v1151 = vxor.u32 %v1146, 2147483648
          %v1152 = vsel %vm1150, %v1145, %v1151
          %vm1153 = vcmp.eq.s32.totalorder %v1148, 2
          %v1154 = vxor.u32 %v1145, 2147483648
          %v1155 = vsel %vm1153, %v1154, %v1146
          %v1156 = vsel %vm1149, %v1152, %v1155
          %v1157 = vsel %vm1147, nan, %v1156
          %v1158 = vmul.f32 %v433, %v433
          %v1159 = vmul.f32 %v537, %v537
          %v1160 = vmul.f32 %v641, %v641
          %v1161 = vmul.f32 %v745, %v745
          %v1162 = vmul.f32 %v433, %v848
          %v1163 = vmul.f32 %v537, %v951
          %v1164 = vmul.f32 %v641, %v1054
          %v1165 = vmul.f32 %v745, %v1157
          %v1166 = vmul.f32 %v848, %v848
          %v1167 = vmul.f32 %v951, %v951
          %v1168 = vmul.f32 %v1054, %v1054
          %v1169 = vmul.f32 %v1157, %v1157
          %1174 = vrot.lane.b32.xlu0 %v1158, 4
          %v1175 = vpop.permute.xlu0 %1174
          %1176 = vrot.lane.b32.xlu0 %v1159, 4
          %v1177 = vpop.permute.xlu0 %1176
          %1178 = vrot.lane.b32.xlu0 %v1160, 4
          %v1179 = vpop.permute.xlu0 %1178
          %1180 = vrot.lane.b32.xlu0 %v1161, 4
          %v1181 = vpop.permute.xlu0 %1180
          %1190 = vrot.lane.b32.xlu0 %v1162, 8
          %v1191 = vpop.permute.xlu0 %1190
          %1192 = vrot.lane.b32.xlu0 %v1163, 8
          %v1193 = vpop.permute.xlu0 %1192
          %1194 = vrot.lane.b32.xlu0 %v1164, 8
          %v1195 = vpop.permute.xlu0 %1194
          %1196 = vrot.lane.b32.xlu0 %v1165, 8
          %v1197 = vpop.permute.xlu0 %1196
          %1206 = vrot.lane.b32.xlu0 %v1166, 12
          %v1207 = vpop.permute.xlu0 %1206
          %1208 = vrot.lane.b32.xlu0 %v1167, 12
          %v1209 = vpop.permute.xlu0 %1208
          %1210 = vrot.lane.b32.xlu0 %v1168, 12
          %v1211 = vpop.permute.xlu0 %1210
          %1212 = vrot.lane.b32.xlu0 %v1169, 12
          %v1213 = vpop.permute.xlu0 %1212
          %vm1218 = vcmask 31744
          %v1219 = vsel %vm1218, %v322, %v1175
          %v1220 = vsel %vm1218, %v323, %v1177
          %v1221 = vsel %vm1218, %v324, %v1179
          %v1222 = vsel %vm1218, %v325, %v1181
          %vm1223 = vcmask 64512
          %v1224 = vsel %vm1223, %v1219, %v1191
          %v1225 = vsel %vm1223, %v1220, %v1193
          %v1226 = vsel %vm1223, %v1221, %v1195
          %v1227 = vsel %vm1223, %v1222, %v1197
          %vm1228 = vcmask 97280
          %v1229 = vsel %vm1228, %v1224, %v1207
          %v1230 = vsel %vm1228, %v1225, %v1209
          %v1231 = vsel %vm1228, %v1226, %v1211
          %v1232 = vsel %vm1228, %v1227, %v1213
          %vm1233 = vcmask 130048
          %1234 = vst.msk [vmem:[#allocation2] sm:$0xff] %vm1233, %v1229
          %1235 = vst.msk [vmem:[#allocation2 + $0x8] sm:$0xff] %vm1233, %v1230
          %1236 = vst.msk [vmem:[#allocation2 + $0x10] sm:$0xff] %vm1233, %v1231
          %1237 = vst.msk [vmem:[#allocation2 + $0x18] sm:$0xff] %vm1233, %v1232
          %1238 = vst [vmem:[%s317] sm:$0xff] 0.0
        $region48: #{improved_spatial_loss.1} parent=39 // pred_fallthru
          _
        %v1239 = vld [vmem:[%s301] sm:$0xff]
        %v1240 = vld [vmem:[%s301 + $0x8] sm:$0xff]
        %v1241 = vld [vmem:[%s309] sm:$0xff]
        %v1242 = vld [vmem:[%s309 + $0x8] sm:$0xff]
        %v1243 = vld [vmem:[%s258] sm:$0xff]
        %v1244 = vld [vmem:[%s258 + $0x8] sm:$0xff]
        %v1245 = vsub.f32 %v1239, %v1241
        %v1246 = vsub.f32 %v1240, %v1242
        %v1247 = vand.u32 2147483647, %v1245
        %v1248 = vand.u32 2147483647, %v1246
        %vm1249 = vcmp.lt.f32.partialorder %v1247, 1.0
        %vm1250 = vcmp.lt.f32.partialorder %v1248, 1.0
        %v1251 = vmul.f32 %v1245, 0.5
        %v1252 = vmul.f32 %v1246, 0.5
        %v1253 = vmul.f32 %v1251, %v1245
        %v1254 = vmul.f32 %v1252, %v1246
        %v1255 = vsub.f32 %v1247, 0.5
        %v1256 = vsub.f32 %v1248, 0.5
        %v1257 = vsel %vm1249, %v1253, %v1255
        %v1258 = vsel %vm1250, %v1254, %v1256
        %vm1259 = vcmask 523264
        %v1260 = vsel %vm1259, %v1257, 0.0
        %v1261 = vsel %vm1259, %v1258, 0.0
        %v1262 = vadd.f32 %v1260, %v1261
        %1263 = vadd.xlane.f32.xlu0 %v1262
        %v1264 = vpop.xlane.xlu0 %1263
        %v1265 = vrot.slane %v1264, 4
        %v1266 = vadd.f32 %v1264, %v1265
        %v1267 = vrot.slane %v1266, 2
        %v1268 = vadd.f32 %v1266, %v1267
        %v1269 = vrot.slane %v1268, 1
        %v1270 = vadd.f32 %v1268, %v1269
        %s1271 = vtos %v1270
        %v1272 = vsel %vm1259, %v1239, 0.0
        %1273 = vadd.xlane.f32.xlu0 %v1272
        %v1274 = vpop.xlane.xlu0 %1273
        %v1275 = vsel %vm1259, %v1240, 0.0
        %1276 = vadd.xlane.f32.xlu0 %v1275
        %v1277 = vpop.xlane.xlu0 %1276
        %v1278 = vsel %vm1259, %v1241, 0.0
        %1279 = vadd.xlane.f32.xlu0 %v1278
        %v1280 = vpop.xlane.xlu0 %1279
        %v1281 = vsel %vm1259, %v1242, 0.0
        %1282 = vadd.xlane.f32.xlu0 %v1281
        %v1283 = vpop.xlane.xlu0 %1282
        %v1284 = vmul.f32 %v1239, %v1241
        %v1285 = vmul.f32 %v1240, %v1242
        %v1286 = vsel %vm1259, %v1284, 0.0
        %1287 = vadd.xlane.f32.xlu0 %v1286
        %v1288 = vpop.xlane.xlu0 %1287
        %v1289 = vsel %vm1259, %v1285, 0.0
        %1290 = vadd.xlane.f32.xlu0 %v1289
        %v1291 = vpop.xlane.xlu0 %1290
        %v1292 = vmul.f32 %v1239, %v1239
        %v1293 = vmul.f32 %v1240, %v1240
        %v1294 = vsel %vm1259, %v1292, 0.0
        %1295 = vadd.xlane.f32.xlu0 %v1294
        %v1296 = vpop.xlane.xlu0 %1295
        %v1297 = vsel %vm1259, %v1293, 0.0
        %1298 = vadd.xlane.f32.xlu0 %v1297
        %v1299 = vpop.xlane.xlu0 %1298
        %v1300 = vmul.f32 %v1241, %v1241
        %v1301 = vmul.f32 %v1242, %v1242
        %v1302 = vsel %vm1259, %v1300, 0.0
        %1303 = vadd.xlane.f32.xlu0 %v1302
        %v1304 = vpop.xlane.xlu0 %1303
        %v1305 = vsel %vm1259, %v1301, 0.0
        %1306 = vadd.xlane.f32.xlu0 %v1305
        %v1307 = vpop.xlane.xlu0 %1306
        %v1308 = vmul.f32 %v1274, %v1280
        %v1309 = vmul.f32 %v1277, %v1283
        %v1310 = vmul.f32 %v1308, 0.015625
        %v1311 = vmul.f32 %v1309, 0.015625
        %v1312 = vsub.f32 %v1288, %v1310
        %v1313 = vsub.f32 %v1291, %v1311
        %v1314 = vmul.f32 %v1274, %v1274
        %v1315 = vmul.f32 %v1277, %v1277
        %v1316 = vmul.f32 %v1314, 0.015625
        %v1317 = vmul.f32 %v1315, 0.015625
        %v1318 = vsub.f32 %v1296, %v1316
        %v1319 = vsub.f32 %v1299, %v1317
        %v1320 = vmax.f32 %v1318, 0.0
        %v1321 = vmax.f32 %v1319, 0.0
        %v1322 = vmul.f32 %v1280, %v1280
        %v1323 = vmul.f32 %v1283, %v1283
        %v1324 = vmul.f32 %v1322, 0.015625
        %v1325 = vmul.f32 %v1323, 0.015625
        %v1326 = vsub.f32 %v1304, %v1324
        %v1327 = vsub.f32 %v1307, %v1325
        %v1328 = vmax.f32 %v1326, 0.0
        %v1329 = vmax.f32 %v1327, 0.0
        %v1330 = vmul.f32 %v1320, %v1328
        %v1331 = vmul.f32 %v1321, %v1329
        %v1332 = vrsqrt.pop %v1330
        %v1333 = vmul.f32 %v1330, %v1332
        %vm1334 = vcmp.eq.f32.partialorder %v1330, inf
        %v1335 = vsel %vm1334, %v1330, %v1333
        %vm1336 = vcmp.eq.f32.partialorder %v1330, 0.0
        %v1337 = vand.u32 %v1330, 2147483648
        %v1338 = vsel %vm1336, %v1337, %v1335
        %v1339 = vrsqrt.pop %v1331
        %v1340 = vmul.f32 %v1331, %v1339
        %vm1341 = vcmp.eq.f32.partialorder %v1331, inf
        %v1342 = vsel %vm1341, %v1331, %v1340
        %vm1343 = vcmp.eq.f32.partialorder %v1331, 0.0
        %v1344 = vand.u32 %v1331, 2147483648
        %v1345 = vsel %vm1343, %v1344, %v1342
        %vm1346 = vcmp.gt.f32.partialorder %v1338, 1e-08
        %vm1347 = vcmp.gt.f32.partialorder %v1345, 1e-08
        %v1348 = vsel %vm1346, %v1338, 1.0
        %v1349 = vsel %vm1347, %v1345, 1.0
        %v1350 = vrcp.pop %v1348
        %v1351 = vmul.f32 %v1312, %v1350
        %v1352 = vrcp.pop %v1349
        %v1353 = vmul.f32 %v1313, %v1352
        %v1354 = vsub.f32 1.0, %v1351
        %v1355 = vsub.f32 1.0, %v1353
        %v1356 = vsel %vm1346, %v1354, 1.0
        %v1357 = vsel %vm1347, %v1355, 1.0
        %s1358 = sadd.s32 %s23, %s24
        %s1359 = smul.u32 %s1358, 16
        %v1360 = vlaneseq
        %v1361 = vshrl.u32 %v1360, 7
        %v1362 = vadd.s32 %v1361, 8
        %v1363 = vstv %s1359
        %v1364 = vadd.s32 %v1363, %v1361
        %v1365 = vadd.s32 %v1363, %v1362
        %vm1366 = vcmp.lt.s32.totalorder %v1364, 32
        %vm1367 = vcmp.lt.s32.totalorder %v1365, 32
        %v1368 = vsel %vm1366, %v1356, 0.0
        %v1369 = vsel %vm1367, %v1357, 0.0
        %vm1370 = vcmask 7168
        %v1371 = vsel %vm1370, %v1368, 0.0
        %v1372 = vsel %vm1370, %v1369, 0.0
        %v1373 = vadd.f32 %v1371, %v1372
        %1374 = vadd.xlane.f32.xlu0 %v1373
        %v1375 = vpop.xlane.xlu0 %1374
        %v1376 = vrot.slane %v1375, 4
        %v1377 = vadd.f32 %v1375, %v1376
        %v1378 = vrot.slane %v1377, 2
        %v1379 = vadd.f32 %v1377, %v1378
        %v1380 = vrot.slane %v1379, 1
        %v1381 = vadd.f32 %v1379, %v1380
        %s1382 = vtos %v1381
        %v1383 = vmul.f32 %v1368, %v1368
        %v1384 = vmul.f32 %v1369, %v1369
        %v1385 = vsel %vm1370, %v1383, 0.0
        %v1386 = vsel %vm1370, %v1384, 0.0
        %v1387 = vadd.f32 %v1385, %v1386
        %1388 = vadd.xlane.f32.xlu0 %v1387
        %v1389 = vpop.xlane.xlu0 %1388
        %v1390 = vrot.slane %v1389, 4
        %v1391 = vadd.f32 %v1389, %v1390
        %v1392 = vrot.slane %v1391, 2
        %v1393 = vadd.f32 %v1391, %v1392
        %v1394 = vrot.slane %v1393, 1
        %v1395 = vadd.f32 %v1393, %v1394
        %s1396 = vtos %v1395
        %v1397 = vld [vmem:[#allocation2] sm:$0xff]
        %v1398 = vld [vmem:[#allocation2 + $0x8] sm:$0xff]
        %v1399 = vld [vmem:[#allocation2 + $0x10] sm:$0xff]
        %v1400 = vld [vmem:[#allocation2 + $0x18] sm:$0xff]
        %vm1401 = vcmask 261120
        %v1403 = vsel %vm1401, %v1243, 0
        %v1406 = vsel %vm1401, %v1244, 0
        %1408 = vmatprep.subr.mxu0 0.0
        %1409 = vmatpush1.msra.mxu0 0.0
        %1410 = vmatprep.subr.mxu0 0.0
        %1411 = vmatpush1.msra.mxu0 0.0
        %1412 = vmatprep.subr.mxu0 0.0
        %1413 = vmatpush1.msra.mxu0 0.0
        %1414 = vmatprep.subr.mxu0 0.0
        %1415 = vmatpush1.msra.mxu0 0.0
        %1416 = vmatprep.subr.mxu0 0.0
        %1417 = vmatpush1.msra.mxu0 0.0
        %1418 = vmatprep.subr.mxu0 0.0
        %1419 = vmatpush1.msra.mxu0 0.0
        %1420 = vmatprep.subr.mxu0 0.0
        %1421 = vmatpush1.msra.mxu0 0.0
        %1422 = vmatprep.subr.mxu0 0.0
        %1423 = vmatpush1.msra.mxu0 0.0
        %1424 = vmatprep.subr.mxu0 0.0
        %1425 = vmatpush1.msra.mxu0 0.0
        %1426 = vmatprep.subr.mxu0 0.0
        %1427 = vmatpush1.msra.mxu0 0.0
        %1428 = vmatprep.subr.mxu0 0.0
        %1429 = vmatpush1.msra.mxu0 0.0
        %1430 = vmatprep.subr.mxu0 0.0
        %1431 = vmatpush1.msra.mxu0 0.0
        %1432 = vmatprep.subr.mxu0 0.0
        %1433 = vmatpush1.msra.mxu0 %v1400
        %1434 = vmatprep.subr.mxu0 0.0
        %1435 = vmatpush1.msra.mxu0 %v1399
        %1436 = vmatprep.subr.mxu0 0.0
        %1437 = vmatpush1.msra.mxu0 %v1398
        %1438 = vmatprep.subr.mxu0 0.0
        %1439 = vmatpush1.msra.mxu0 %v1397
        %1440 = vmatprep.subr.mxu0 0.0
        %1441 = vmatpush2.msra.mxu0 0.0
        %1442 = vmatprep.subr.mxu0 0.0
        %1443 = vmatpush2.msra.mxu0 0.0
        %1444 = vmatprep.subr.mxu0 0.0
        %1445 = vmatpush2.msra.mxu0 0.0
        %1446 = vmatprep.subr.mxu0 0.0
        %1447 = vmatpush2.msra.mxu0 0.0
        %1448 = vmatprep.subr.mxu0 0.0
        %1449 = vmatpush2.msra.mxu0 0.0
        %1450 = vmatprep.subr.mxu0 0.0
        %1451 = vmatpush2.msra.mxu0 0.0
        %1452 = vmatprep.subr.mxu0 0.0
        %1453 = vmatpush2.msra.mxu0 0.0
        %1454 = vmatprep.subr.mxu0 0.0
        %1455 = vmatpush2.msra.mxu0 0.0
        %1456 = vmatprep.subr.mxu0 0.0
        %1457 = vmatpush2.msra.mxu0 0.0
        %1458 = vmatprep.subr.mxu0 0.0
        %1459 = vmatpush2.msra.mxu0 0.0
        %1460 = vmatprep.subr.mxu0 0.0
        %1461 = vmatpush2.msra.mxu0 0.0
        %1462 = vmatprep.subr.mxu0 0.0
        %1463 = vmatpush2.msra.mxu0 0.0
        %1464 = vmatprep.subr.mxu0 0.0
        %1465 = vmatpush2.msra.mxu0 0.0
        %1466 = vmatprep.subr.mxu0 0.0
        %1467 = vmatpush2.msra.mxu0 0.0
        %1468 = vmatprep.subr.mxu0 0.0
        %1469 = vmatpush2.msra.mxu0 0.0
        %1470 = vmatprep.subr.mxu0 0.0
        %1471 = vmatpush2.msra.mxu0 0.0
        %1472 = vmatprep.mubr.f32.mxu0 0.0
        %1473 = vmatmul.mubr.f32.gmra.mxu0 %v1403
        %v1474 = vpop.f32.mrf.mxu0
        %v1475 = vadd.f32 0.0, %v1474
        %v1476 = vpop.f32.mrf.mxu0
        %1477 = vmatprep.mubr.f32.mxu0 0.0
        %1478 = vmatmul.mubr.f32.gmra.mxu0 %v1406
        %v1479 = vpop.f32.mrf.mxu0
        %v1480 = vadd.f32 0.0, %v1479
        %v1481 = vpop.f32.mrf.mxu0
        %1482 = vdwg.mxu0
        %s1483 = scalar_lea.vmem [#allocation2], %s1359
        %v1484 = vld [vmem:[%s1483] sm:$0xff]
        %v1485 = vld [vmem:[%s1483 + $0x8] sm:$0xff]
        %v1486 = vsub.f32 %v1484, %v1475
        %v1487 = vsub.f32 %v1485, %v1480
        %v1488 = vmul.f32 %v1486, %v1486
        %v1489 = vmul.f32 %v1487, %v1487
        %1492 = vrot.lane.b32.xlu0 %v1475, 8
        %v1493 = vpop.permute.xlu0 %1492
        %1494 = vrot.lane.b32.xlu0 %v1480, 8
        %v1495 = vpop.permute.xlu0 %1494
        %v1498 = vmul.f32 %v1484, %v1493
        %v1499 = vmul.f32 %v1485, %v1495
        %v1500 = vmul.f32 %v1484, 2.0
        %v1501 = vmul.f32 %v1485, 2.0
        %v1502 = vmul.f32 %v1500, %v1475
        %v1503 = vmul.f32 %v1501, %v1480
        %1506 = vrot.lane.b32.xlu0 %v1502, 4
        %v1507 = vpop.permute.xlu0 %1506
        %1508 = vrot.lane.b32.xlu0 %v1503, 4
        %v1509 = vpop.permute.xlu0 %1508
        %v1512 = vsub.f32 %v1498, %v1507
        %v1513 = vsub.f32 %v1499, %v1509
        %1514 = vrot.lane.b32.xlu0 %v1475, 120
        %v1515 = vpop.permute.xlu0 %1514
        %1516 = vrot.lane.b32.xlu0 %v1480, 120
        %v1517 = vpop.permute.xlu0 %1516
        %v1520 = vmul.f32 %v1484, %v1515
        %v1521 = vmul.f32 %v1485, %v1517
        %1524 = vrot.lane.b32.xlu0 %v1520, 8
        %v1525 = vpop.permute.xlu0 %1524
        %1526 = vrot.lane.b32.xlu0 %v1521, 8
        %v1527 = vpop.permute.xlu0 %1526
        %v1530 = vadd.f32 %v1512, %v1525
        %v1531 = vadd.f32 %v1513, %v1527
        %v1532 = vmax.f32 %v1530, 0.0
        %v1533 = vmax.f32 %v1531, 0.0
        %v1534 = vlaneseq
        %v1535 = vand.u32 %v1534, 127
        %vm1536 = vcmp.eq.s32.totalorder %v1535, 2
        %v1537 = vsel %vm1536, 1.5, 1.0
        %v1538 = vmul.f32 %v1532, 0.5
        %v1539 = vmul.f32 %v1533, 0.5
        %1542 = vrot.lane.b32.xlu0 %v1538, 116
        %v1543 = vpop.permute.xlu0 %1542
        %1544 = vrot.lane.b32.xlu0 %v1539, 116
        %v1545 = vpop.permute.xlu0 %1544
        %v1548 = vadd.f32 %v1488, %v1543
        %v1549 = vadd.f32 %v1489, %v1545
        %v1550 = vmul.f32 %v1548, %v1537
        %v1551 = vmul.f32 %v1549, %v1537
        %vm1552 = vcmask 31744
        %v1553 = vsel %vm1552, %v1550, 0.0
        %v1554 = vsel %vm1552, %v1551, 0.0
        %v1555 = vadd.f32 %v1553, %v1554
        %1556 = vadd.xlane.f32.xlu0 %v1555
        %v1557 = vpop.xlane.xlu0 %1556
        %v1558 = vrot.slane %v1557, 4
        %v1559 = vadd.f32 %v1557, %v1558
        %v1560 = vrot.slane %v1559, 2
        %v1561 = vadd.f32 %v1559, %v1560
        %v1562 = vrot.slane %v1561, 1
        %v1563 = vadd.f32 %v1561, %v1562
        %s1564 = vtos %v1563
        %v1565 = vsel %vm1552, %v1484, 0.0
        %1566 = vadd.xlane.f32.xlu0 %v1565
        %v1567 = vpop.xlane.xlu0 %1566
        %v1568 = vsel %vm1552, %v1485, 0.0
        %1569 = vadd.xlane.f32.xlu0 %v1568
        %v1570 = vpop.xlane.xlu0 %1569
        %v1571 = vsub.f32 %v1567, 100.0
        %v1572 = vsub.f32 %v1570, 100.0
        %v1573 = vmax.f32 %v1571, 0.0
        %v1574 = vmax.f32 %v1572, 0.0
        %v1575 = vsel %vm1370, %v1573, 0.0
        %v1576 = vsel %vm1370, %v1574, 0.0
        %v1577 = vadd.f32 %v1575, %v1576
        %1578 = vadd.xlane.f32.xlu0 %v1577
        %v1579 = vpop.xlane.xlu0 %1578
        %v1580 = vrot.slane %v1579, 4
        %v1581 = vadd.f32 %v1579, %v1580
        %v1582 = vrot.slane %v1581, 2
        %v1583 = vadd.f32 %v1581, %v1582
        %v1584 = vrot.slane %v1583, 1
        %v1585 = vadd.f32 %v1583, %v1584
        %s1586 = vtos %v1585
        %v1587 = vsel %vm1536, -inf, %v1484
        %v1588 = vsel %vm1536, -inf, %v1485
        %v1589 = vsel %vm1552, %v1587, -inf
        %1590 = vmax.xlane.f32.xlu0 %v1589
        %v1591 = vpop.xlane.xlu0 %1590
        %v1592 = vsel %vm1552, %v1588, -inf
        %1593 = vmax.xlane.f32.xlu0 %v1592
        %v1594 = vpop.xlane.xlu0 %1593
        %v1595 = vsub.f32 %v1591, %v1484
        %v1596 = vsub.f32 %v1594, %v1485
        %v1597 = vmax.f32 %v1595, 0.0
        %v1598 = vmax.f32 %v1596, 0.0
        %1601 = vrot.lane.b32.xlu0 %v1597, 126
        %v1602 = vpop.permute.xlu0 %1601
        %1603 = vrot.lane.b32.xlu0 %v1598, 126
        %v1604 = vpop.permute.xlu0 %1603
        %v1607 = vsel %vm1370, %v1602, 0.0
        %v1608 = vsel %vm1370, %v1604, 0.0
        %v1609 = vadd.f32 %v1607, %v1608
        %1610 = vadd.xlane.f32.xlu0 %v1609
        %v1611 = vpop.xlane.xlu0 %1610
        %v1612 = vrot.slane %v1611, 4
        %v1613 = vadd.f32 %v1611, %v1612
        %v1614 = vrot.slane %v1613, 2
        %v1615 = vadd.f32 %v1613, %v1614
        %v1616 = vrot.slane %v1615, 1
        %v1617 = vadd.f32 %v1615, %v1616
        %s1618 = vtos %v1617
        %1621 = vrot.lane.b32.xlu0 %v1484, 127
        %v1622 = vpop.permute.xlu0 %1621
        %1623 = vrot.lane.b32.xlu0 %v1485, 127
        %v1624 = vpop.permute.xlu0 %1623
        %v1627 = vsub.f32 %v1484, %v1622
        %v1628 = vsub.f32 %v1485, %v1624
        %v1629 = vmax.f32 %v1627, 0.0
        %v1630 = vmax.f32 %v1628, 0.0
        %1633 = vrot.lane.b32.xlu0 %v1629, 127
        %v1634 = vpop.permute.xlu0 %1633
        %1635 = vrot.lane.b32.xlu0 %v1630, 127
        %v1636 = vpop.permute.xlu0 %1635
        %v1639 = vadd.f32 %v1629, %v1634
        %v1640 = vadd.f32 %v1630, %v1636
        %v1641 = vsel %vm1370, %v1639, 0.0
        %v1642 = vsel %vm1370, %v1640, 0.0
        %v1643 = vadd.f32 %v1641, %v1642
        %1644 = vadd.xlane.f32.xlu0 %v1643
        %v1645 = vpop.xlane.xlu0 %1644
        %v1646 = vrot.slane %v1645, 4
        %v1647 = vadd.f32 %v1645, %v1646
        %v1648 = vrot.slane %v1647, 2
        %v1649 = vadd.f32 %v1647, %v1648
        %v1650 = vrot.slane %v1649, 1
        %v1651 = vadd.f32 %v1649, %v1650
        %s1652 = vtos %v1651
        %vm1653 = vcmp.eq.s32.totalorder %v1361, 0
        %vm1654 = vcmp.eq.s32.totalorder %v1535, 0
        %vm1655 = vmand %vm1653, %vm1654
        %v1656 = vstv %s1271
        %v1657 = vsel %vm1655, %v1656, 0.0
        %vm1658 = vcmp.eq.s32.totalorder %v1535, 1
        %vm1659 = vmand %vm1653, %vm1658
        %v1660 = vstv %s1564
        %v1661 = vsel %vm1659, %v1660, 0.0
        %v1662 = vadd.f32 %v1657, %v1661
        %vm1663 = vmand %vm1653, %vm1536
        %v1664 = vstv %s1586
        %v1665 = vsel %vm1663, %v1664, 0.0
        %v1666 = vadd.f32 %v1662, %v1665
        %vm1667 = vcmp.eq.s32.totalorder %v1535, 3
        %vm1668 = vmand %vm1653, %vm1667
        %v1669 = vstv %s1618
        %v1670 = vsel %vm1668, %v1669, 0.0
        %v1671 = vadd.f32 %v1666, %v1670
        %vm1672 = vcmp.eq.s32.totalorder %v1535, 4
        %vm1673 = vmand %vm1653, %vm1672
        %v1674 = vstv %s1652
        %v1675 = vsel %vm1673, %v1674, 0.0
        %v1676 = vadd.f32 %v1671, %v1675
        %vm1677 = vcmp.eq.s32.totalorder %v1535, 5
        %vm1678 = vmand %vm1653, %vm1677
        %v1679 = vstv %s1382
        %v1680 = vsel %vm1678, %v1679, 0.0
        %v1681 = vadd.f32 %v1676, %v1680
        %vm1682 = vcmp.eq.s32.totalorder %v1535, 6
        %vm1683 = vmand %vm1653, %vm1682
        %v1684 = vstv %s1396
        %v1685 = vsel %vm1683, %v1684, 0.0
        %v1686 = vadd.f32 %v1681, %v1685
        %v1687 = vld [vmem:[%s317] sm:$0xff]
        %v1688 = vadd.f32 %v1687, %v1686
        %1689 = vst [vmem:[%s317] sm:$0xff] %v1688
        %p1690 = scmp.lt.s32.totalorder %s23, 1
        %s1691 = scalar_select %p1690, %s23, 1
        %s1692 = smul.addr %s1691, 8
        %s1693 = scalar_lea.vmem %s5, %s1692
        // Predicated region
        $region49: #{improved_spatial_loss.1} parent=39 // pred_check
          %p1694 = pneg %p175
        $region50: #{improved_spatial_loss.1} parent=39 // pred_check_branch
          %1696 = sbr.rel (%p1694) target = $region52
        $region51: #{improved_spatial_loss.1} parent=39 // pred_region
          _
        $region52: #{improved_spatial_loss.1} parent=39 // pred_fallthru
          _
      $region40: #{improved_spatial_loss.1} parent=5 // pred_fallthru
        _
      %p1697 = scmp.le.s32.totalorder 2, %s14
      // Predicated region
      $region53: #{improved_spatial_loss.1} parent=5 // pred_check
        %p1698 = pneg %p1697
      $region54: #{improved_spatial_loss.1} parent=5 // pred_check_branch
        %1700 = sbr.rel (%p1698) target = $region56
      $region55: #{improved_spatial_loss.1} parent=5 // pred_region
        %s1701 = ssub.s32 %s14, 2
        // Predicated region
        $region57: #{improved_spatial_loss.1} parent=55 // pred_check
          %p1702 = pneg %p181
        $region58: #{improved_spatial_loss.1} parent=55 // pred_check_branch
          %1704 = sbr.rel (%p1702) target = $region60
        $region59: #{improved_spatial_loss.1} parent=55 // pred_region
          %p1705 = scmp.lt.s32.totalorder %s25, 1
          %s1706 = scalar_select %p1705, %s25, 1
          %s1707 = smul.addr %s1706, 8
          %s1708 = scalar_lea.vmem %s5, %s1707
        $region60: #{improved_spatial_loss.1} parent=55 // pred_fallthru
          _
      $region56: #{improved_spatial_loss.1} parent=5 // pred_fallthru
        _
    $region6: #{improved_spatial_loss.1} parent=1 // loop_footer
      %s18 = sadd.s32 1, %s14
    $region7: #{improved_spatial_loss.1} parent=1 // loop_footer_branch
      %13 = sbr.rel target = $region3
    $region8: #{improved_spatial_loss.1} parent=1 // loop_exit
      _
    %1709 = vsyncpa [#allocation4], 1
    %s1710 = scalar_lea.sflag [#allocation4], 1
    %1711 = vsyncpa %s1710, 1

</llo_original>
